<compile_context>
chip_gen: v6e
topology: v6e:2x2x1
jax: 0.10.0
libtpu: 0.0.40
codegen_flags: <defaults>
</compile_context>

<pallas_src>
import functools

import jax
import jax.numpy as jnp
from jax import lax
from jax.experimental import pallas as pl
from jax.experimental.pallas import tpu as pltpu


def _round_up(a, b):
    return ((a + b - 1) // b) * b


def _phi0_kernel(xa_ref, xb_ref, w_ref, o_ref, slab_ref, *,
                 tap_offsets, chunk, c_out_p, k2_pad):
    """One grid step: Phi0 for `tile_m` flat output pixels of one batch image.

    xa_ref  : (3, tile_m)         flat padded-input, tile i      (VMEM, pipelined)
    xb_ref  : (3, tile_m)         flat padded-input, tile i+1    (conv halo)
    w_ref   : (2*c_out_p, k2_pad) stacked [W0; W1] taps          (constant block)
    o_ref   : (c_out_p, tile_m)   flat output tile (channel-major, lane-dense)
    slab_ref: (3, 2*tile_m)       scratch: contiguous [tile i | tile i+1]
    """
    tile_m = xa_ref.shape[-1]
    n_in = xa_ref.shape[0]

    # In-kernel im2col setup: make the two pipelined blocks contiguous so every
    # conv tap is a plain static lane-slice (no (3, k*k, M) patches in HBM).
    slab_ref[:, :tile_m] = xa_ref[...]
    slab_ref[:, tile_m:] = xb_ref[...]

    w = w_ref[...]                                           # (2*c_out_p, k2_pad)
    zero_rows = k2_pad - len(tap_offsets)
    zpad = jnp.zeros((zero_rows, chunk), jnp.float32) if zero_rows else None

    # Inner lane-chunk loop: bounds live vregs so large tile_m never spills.
    for j in range(tile_m // chunk):                         # static unroll
        m0 = j * chunk
        acc = jnp.zeros((c_out_p, chunk), jnp.float32)
        for c in range(n_in):                                # 3 input channels
            # k*k taps, each a static contiguous lane slice of the slab.
            rows = [slab_ref[c:c + 1, m0 + off:m0 + off + chunk]
                    for off in tap_offsets]
            if zpad is not None:
                rows.append(zpad)
            p = jnp.concatenate(rows, axis=0)                # (k2_pad, chunk)
            # One fused matmul yields both the W0 and W1 responses.
            # TODO(synk): fuse the 3 channels into a single (K, 3*chunk) MXU
            # push once the kernel becomes issue-bound (low priority per review).
            y = jnp.dot(w, p, preferred_element_type=jnp.float32)
            acc = acc + y[:c_out_p, :] * y[c_out_p:, :]
        o_ref[:, m0:m0 + chunk] = acc.astype(o_ref.dtype)


def phi0_layer(x, w0, w1, *, padding=2, chunk=512, max_tile=2048):
    """x: (B, 3, N, N) f32 NCHW.  w0, w1: (C_out, 1, k, k) f32 (PyTorch OIHW).
    Returns Phi0 of shape (B, C_out, n_out, n_out), n_out = N + 2*padding - k + 1."""
    B, c_in, N, _ = x.shape
    c_out, _, k, _ = w0.shape
    p = padding
    n_out = N + 2 * p - k + 1
    wp = N + 2 * p                      # padded row pitch of the flat pixel stream
    hp = N + 2 * p                      # padded rows actually holding image data
    assert n_out >= 1 and c_in == 3

    c_out_p = _round_up(c_out, 8)       # 8-aligned sublanes (review concern)
    k2 = k * k
    k2_pad = _round_up(k2, 8)           # 25 -> 32 taps
    q_total = n_out * wp                # flat outputs (k-1 junk cols per row)
    halo = (k - 1) * wp + (k - 1)       # largest tap offset

    # Tile size: large (amortize per-step overhead), multiple of the inner
    # chunk, and >= halo so slab [tile i | tile i+1] covers every tap read.
    tile_m = max(chunk,
                 min(max_tile, _round_up(q_total, chunk)),
                 _round_up(halo, chunk))
    assert tile_m % chunk == 0
    n_tiles = pl.cdiv(q_total, tile_m)
    q_pad = n_tiles * tile_m
    flat_need = q_pad + tile_m          # tile i+1 of the last step must exist

    # Single cheap pad of the *raw* input: conv padding + enough zero rows at
    # the bottom that the flat stream covers `flat_need` pixels per image.
    pad_rows = pl.cdiv(max(flat_need - hp * wp, 0), wp)
    xp = jnp.pad(x, ((0, 0), (0, 0), (p, p + pad_rows), (p, p)))
    xflat = xp.reshape(B, c_in, (hp + pad_rows) * wp)

    # Stacked [W0; W1] taps, channel-padded to c_out_p, tap-padded to k2_pad.
    def _prep(w):
        w2 = w.reshape(c_out, k2).astype(jnp.float32)
        return jnp.pad(w2, ((0, c_out_p - c_out), (0, k2_pad - k2)))
    w_cat = jnp.concatenate([_prep(w0), _prep(w1)], axis=0)   # (2*c_out_p, k2_pad)

    # Flat offset of tap (ky, kx); order matches OIHW row-major w.reshape.
    tap_offsets = tuple(ky * wp + kx for ky in range(k) for kx in range(k))

    kernel = functools.partial(_phi0_kernel, tap_offsets=tap_offsets,
                               chunk=chunk, c_out_p=c_out_p, k2_pad=k2_pad)

    out_flat = pl.pallas_call(
        kernel,
        out_shape=jax.ShapeDtypeStruct((B, c_out_p, q_pad), jnp.float32),
        grid=(B, n_tiles),
        in_specs=[
            pl.BlockSpec((None, c_in, tile_m), lambda b, i: (b, 0, i)),
            # Same array again, shifted one tile: supplies the conv halo.
            # TODO(synk): shrink this halo block to cut the ~2x input re-read.
            pl.BlockSpec((None, c_in, tile_m), lambda b, i: (b, 0, i + 1)),
            pl.BlockSpec((2 * c_out_p, k2_pad), lambda b, i: (0, 0)),
        ],
        out_specs=pl.BlockSpec((None, c_out_p, tile_m), lambda b, i: (b, 0, i)),
        scratch_shapes=[pltpu.VMEM((c_in, 2 * tile_m), jnp.float32)],
        compiler_params=pltpu.CompilerParams(
            dimension_semantics=("parallel", "parallel")),
    )(xflat, xflat, w_cat)

    # Drop channel padding and the k-1 junk columns per row; layout is already
    # channel-major, so there is no transpose pass.
    out = out_flat[:, :c_out, :q_total].reshape(B, c_out, n_out, wp)
    out = out[:, :, :, :n_out]
    # TODO(synk): fold a per-row compaction store into the kernel to remove
    # this last column-slice pass over the output.
    return out


def _reference(x, w0, w1, padding):
    """Pure-JAX reference (PyTorch cross-correlation semantics)."""
    B, C, N, _ = x.shape
    dn = lax.conv_dimension_numbers(
        (B, 1, N, N), w0.shape, ("NCHW", "OIHW", "NCHW"))
    acc = None
    for c in range(C):
        xc = x[:, c:c + 1]
        a = lax.conv_general_dilated(xc, w0, (1, 1), [(padding, padding)] * 2,
                                     dimension_numbers=dn,
                                     precision=lax.Precision.HIGHEST)
        b = lax.conv_general_dilated(xc, w1, (1, 1), [(padding, padding)] * 2,
                                     dimension_numbers=dn,
                                     precision=lax.Precision.HIGHEST)
        y = a * b
        acc = y if acc is None else acc + y
    return acc


if __name__ == "__main__":
    # Small, module-consistent shapes.
    B, N = 2, 16
    out_channels, kernel_size, padding = 8, 5, 2

    key = jax.random.PRNGKey(0)
    kx_, k0, k1 = jax.random.split(key, 3)
    x = jax.random.normal(kx_, (B, 3, N, N), dtype=jnp.float32)
    # Deterministic "Conv2d(1, out_channels, k, bias=False)" weights, OIHW.
    fan_in = 1 * kernel_size * kernel_size
    bound = 1.0 / (fan_in ** 0.5)
    w0 = jax.random.uniform(k0, (out_channels, 1, kernel_size, kernel_size),
                            minval=-bound, maxval=bound, dtype=jnp.float32)
    w1 = jax.random.uniform(k1, (out_channels, 1, kernel_size, kernel_size),
                            minval=-bound, maxval=bound, dtype=jnp.float32)

    out = phi0_layer(x, w0, w1, padding=padding)
    out = jax.block_until_ready(out)

    ref = _reference(x, w0, w1, padding)
    assert out.shape == (B, out_channels, N, N), out.shape
    max_err = float(jnp.max(jnp.abs(out - ref)))
    assert max_err < 5e-2, max_err

    print("KERNEL_OK")
</pallas_src>

<mosaic_0001>
module attributes {stable_mosaic.version = 11 : i64} {
  func.func @_phi0_kernel(%arg0: i32, %arg1: i32, %arg2: memref<1x3x512xf32, #tpu.memory_space<vmem>>, %arg3: memref<1x3x512xf32, #tpu.memory_space<vmem>>, %arg4: memref<16x32xf32, #tpu.memory_space<vmem>>, %arg5: memref<1x8x512xf32, #tpu.memory_space<vmem>>, %arg6: memref<3x1024xf32, #tpu.memory_space<vmem>>) attributes {dimension_semantics = [#tpu.dimension_semantics<parallel>, #tpu.dimension_semantics<parallel>], iteration_bounds = array<i64: 2, 1>, scalar_prefetch = 0 : i64, scratch_operands = 1 : i64, tpu.core_type = #tpu.core_type<tc>, window_params = [{transform_indices = @transform_0, window_bounds = array<i64: 1, 3, 512>}, {transform_indices = @transform_1, window_bounds = array<i64: 1, 3, 512>}, {pipeline_mode = #tpu.pipeline_mode<synchronous>, transform_indices = @transform_2, window_bounds = array<i64: 16, 32>}, {transform_indices = @transform_3, window_bounds = array<i64: 1, 8, 512>}]} {
    %c0 = arith.constant 0 : index
    %c0_0 = arith.constant 0 : index
    %c0_1 = arith.constant 0 : index
    %0 = vector.load %arg2[%c0, %c0_0, %c0_1] : memref<1x3x512xf32, #tpu.memory_space<vmem>>, vector<1x3x512xf32>
    %1 = vector.shape_cast %0 : vector<1x3x512xf32> to vector<3x512xf32>
    %c0_2 = arith.constant 0 : index
    %c0_3 = arith.constant 0 : index
    %2 = vector.load %arg6[%c0_2, %c0_3] : memref<3x1024xf32, #tpu.memory_space<vmem>>, vector<3x512xf32>
    tpu.vector_store %arg6[%c0_2, %c0_3], %1 {strides = array<i32>} : memref<3x1024xf32, #tpu.memory_space<vmem>>, vector<3x512xf32>,
    %c0_4 = arith.constant 0 : index
    %c0_5 = arith.constant 0 : index
    %c0_6 = arith.constant 0 : index
    %3 = vector.load %arg3[%c0_4, %c0_5, %c0_6] : memref<1x3x512xf32, #tpu.memory_space<vmem>>, vector<1x3x512xf32>
    %4 = vector.shape_cast %3 : vector<1x3x512xf32> to vector<3x512xf32>
    %c0_7 = arith.constant 0 : index
    %c512 = arith.constant 512 : index
    %5 = vector.load %arg6[%c0_7, %c512] : memref<3x1024xf32, #tpu.memory_space<vmem>>, vector<3x512xf32>
    tpu.vector_store %arg6[%c0_7, %c512], %4 {strides = array<i32>} : memref<3x1024xf32, #tpu.memory_space<vmem>>, vector<3x512xf32>,
    %c0_8 = arith.constant 0 : index
    %c0_9 = arith.constant 0 : index
    %6 = vector.load %arg4[%c0_8, %c0_9] : memref<16x32xf32, #tpu.memory_space<vmem>>, vector<16x32xf32>
    %cst = arith.constant 0.000000e+00 : f32
    %7 = vector.broadcast %cst : f32 to vector<7x512xf32>
    %cst_10 = arith.constant 0.000000e+00 : f32
    %8 = vector.broadcast %cst_10 : f32 to vector<8x512xf32>
    %c0_11 = arith.constant 0 : index
    %c0_12 = arith.constant 0 : index
    %9 = vector.load %arg6[%c0_11, %c0_12] : memref<3x1024xf32, #tpu.memory_space<vmem>>, vector<1x512xf32>
    %c0_13 = arith.constant 0 : index
    %c1 = arith.constant 1 : index
    %10 = vector.load %arg6[%c0_13, %c1] : memref<3x1024xf32, #tpu.memory_space<vmem>>, vector<1x512xf32>
    %c0_14 = arith.constant 0 : index
    %c2 = arith.constant 2 : index
    %11 = vector.load %arg6[%c0_14, %c2] : memref<3x1024xf32, #tpu.memory_space<vmem>>, vector<1x512xf32>
    %c0_15 = arith.constant 0 : index
    %c3 = arith.constant 3 : index
    %12 = vector.load %arg6[%c0_15, %c3] : memref<3x1024xf32, #tpu.memory_space<vmem>>, vector<1x512xf32>
    %c0_16 = arith.constant 0 : index
    %c4 = arith.constant 4 : index
    %13 = vector.load %arg6[%c0_16, %c4] : memref<3x1024xf32, #tpu.memory_space<vmem>>, vector<1x512xf32>
    %c0_17 = arith.constant 0 : index
    %c20 = arith.constant 20 : index
    %14 = vector.load %arg6[%c0_17, %c20] : memref<3x1024xf32, #tpu.memory_space<vmem>>, vector<1x512xf32>
    %c0_18 = arith.constant 0 : index
    %c21 = arith.constant 21 : index
    %15 = vector.load %arg6[%c0_18, %c21] : memref<3x1024xf32, #tpu.memory_space<vmem>>, vector<1x512xf32>
    %c0_19 = arith.constant 0 : index
    %c22 = arith.constant 22 : index
    %16 = vector.load %arg6[%c0_19, %c22] : memref<3x1024xf32, #tpu.memory_space<vmem>>, vector<1x512xf32>
    %c0_20 = arith.constant 0 : index
    %c23 = arith.constant 23 : index
    %17 = vector.load %arg6[%c0_20, %c23] : memref<3x1024xf32, #tpu.memory_space<vmem>>, vector<1x512xf32>
    %c0_21 = arith.constant 0 : index
    %c24 = arith.constant 24 : index
    %18 = vector.load %arg6[%c0_21, %c24] : memref<3x1024xf32, #tpu.memory_space<vmem>>, vector<1x512xf32>
    %c0_22 = arith.constant 0 : index
    %c40 = arith.constant 40 : index
    %19 = vector.load %arg6[%c0_22, %c40] : memref<3x1024xf32, #tpu.memory_space<vmem>>, vector<1x512xf32>
    %c0_23 = arith.constant 0 : index
    %c41 = arith.constant 41 : index
    %20 = vector.load %arg6[%c0_23, %c41] : memref<3x1024xf32, #tpu.memory_space<vmem>>, vector<1x512xf32>
    %c0_24 = arith.constant 0 : index
    %c42 = arith.constant 42 : index
    %21 = vector.load %arg6[%c0_24, %c42] : memref<3x1024xf32, #tpu.memory_space<vmem>>, vector<1x512xf32>
    %c0_25 = arith.constant 0 : index
    %c43 = arith.constant 43 : index
    %22 = vector.load %arg6[%c0_25, %c43] : memref<3x1024xf32, #tpu.memory_space<vmem>>, vector<1x512xf32>
    %c0_26 = arith.constant 0 : index
    %c44 = arith.constant 44 : index
    %23 = vector.load %arg6[%c0_26, %c44] : memref<3x1024xf32, #tpu.memory_space<vmem>>, vector<1x512xf32>
    %c0_27 = arith.constant 0 : index
    %c60 = arith.constant 60 : index
    %24 = vector.load %arg6[%c0_27, %c60] : memref<3x1024xf32, #tpu.memory_space<vmem>>, vector<1x512xf32>
    %c0_28 = arith.constant 0 : index
    %c61 = arith.constant 61 : index
    %25 = vector.load %arg6[%c0_28, %c61] : memref<3x1024xf32, #tpu.memory_space<vmem>>, vector<1x512xf32>
    %c0_29 = arith.constant 0 : index
    %c62 = arith.constant 62 : index
    %26 = vector.load %arg6[%c0_29, %c62] : memref<3x1024xf32, #tpu.memory_space<vmem>>, vector<1x512xf32>
    %c0_30 = arith.constant 0 : index
    %c63 = arith.constant 63 : index
    %27 = vector.load %arg6[%c0_30, %c63] : memref<3x1024xf32, #tpu.memory_space<vmem>>, vector<1x512xf32>
    %c0_31 = arith.constant 0 : index
    %c64 = arith.constant 64 : index
    %28 = vector.load %arg6[%c0_31, %c64] : memref<3x1024xf32, #tpu.memory_space<vmem>>, vector<1x512xf32>
    %c0_32 = arith.constant 0 : index
    %c80 = arith.constant 80 : index
    %29 = vector.load %arg6[%c0_32, %c80] : memref<3x1024xf32, #tpu.memory_space<vmem>>, vector<1x512xf32>
    %c0_33 = arith.constant 0 : index
    %c81 = arith.constant 81 : index
    %30 = vector.load %arg6[%c0_33, %c81] : memref<3x1024xf32, #tpu.memory_space<vmem>>, vector<1x512xf32>
    %c0_34 = arith.constant 0 : index
    %c82 = arith.constant 82 : index
    %31 = vector.load %arg6[%c0_34, %c82] : memref<3x1024xf32, #tpu.memory_space<vmem>>, vector<1x512xf32>
    %c0_35 = arith.constant 0 : index
    %c83 = arith.constant 83 : index
    %32 = vector.load %arg6[%c0_35, %c83] : memref<3x1024xf32, #tpu.memory_space<vmem>>, vector<1x512xf32>
    %c0_36 = arith.constant 0 : index
    %c84 = arith.constant 84 : index
    %33 = vector.load %arg6[%c0_36, %c84] : memref<3x1024xf32, #tpu.memory_space<vmem>>, vector<1x512xf32>
    %34 = tpu.concatenate %9, %10, %11, %12, %13, %14, %15, %16, %17, %18, %19, %20, %21, %22, %23, %24 in 0 : vector<1x512xf32>, vector<1x512xf32>, vector<1x512xf32>, vector<1x512xf32>, vector<1x512xf32>, vector<1x512xf32>, vector<1x512xf32>, vector<1x512xf32>, vector<1x512xf32>, vector<1x512xf32>, vector<1x512xf32>, vector<1x512xf32>, vector<1x512xf32>, vector<1x512xf32>, vector<1x512xf32>, vector<1x512xf32> -> vector<16x512xf32>
    %35 = tpu.concatenate %25, %26, %27, %28, %29, %30, %31, %32, %33, %7 in 0 : vector<1x512xf32>, vector<1x512xf32>, vector<1x512xf32>, vector<1x512xf32>, vector<1x512xf32>, vector<1x512xf32>, vector<1x512xf32>, vector<1x512xf32>, vector<1x512xf32>, vector<7x512xf32> -> vector<16x512xf32>
    %36 = tpu.concatenate %34, %35 in 0 : vector<16x512xf32>, vector<16x512xf32> -> vector<32x512xf32>
    %cst_37 = arith.constant dense<0.000000e+00> : vector<16x512xf32>
    %37 = tpu.matmul %6, %36, %cst_37 {dimension_numbers = #tpu.dot_dimension_numbers<[1], [0], [0], [1], [0, 0, 1, 1], [], []>} : vector<16x32xf32>, vector<32x512xf32>, vector<16x512xf32> -> vector<16x512xf32>
    %38 = vector.extract_strided_slice %37 {offsets = [0, 0], sizes = [8, 512], strides = [1, 1]} : vector<16x512xf32> to vector<8x512xf32>
    %39 = vector.extract_strided_slice %37 {offsets = [8, 0], sizes = [8, 512], strides = [1, 1]} : vector<16x512xf32> to vector<8x512xf32>
    %40 = arith.mulf %38, %39 : vector<8x512xf32>
    %41 = arith.addf %8, %40 : vector<8x512xf32>
    %c1_38 = arith.constant 1 : index
    %c0_39 = arith.constant 0 : index
    %42 = vector.load %arg6[%c1_38, %c0_39] : memref<3x1024xf32, #tpu.memory_space<vmem>>, vector<1x512xf32>
    %c1_40 = arith.constant 1 : index
    %c1_41 = arith.constant 1 : index
    %43 = vector.load %arg6[%c1_40, %c1_41] : memref<3x1024xf32, #tpu.memory_space<vmem>>, vector<1x512xf32>
    %c1_42 = arith.constant 1 : index
    %c2_43 = arith.constant 2 : index
    %44 = vector.load %arg6[%c1_42, %c2_43] : memref<3x1024xf32, #tpu.memory_space<vmem>>, vector<1x512xf32>
    %c1_44 = arith.constant 1 : index
    %c3_45 = arith.constant 3 : index
    %45 = vector.load %arg6[%c1_44, %c3_45] : memref<3x1024xf32, #tpu.memory_space<vmem>>, vector<1x512xf32>
    %c1_46 = arith.constant 1 : index
    %c4_47 = arith.constant 4 : index
    %46 = vector.load %arg6[%c1_46, %c4_47] : memref<3x1024xf32, #tpu.memory_space<vmem>>, vector<1x512xf32>
    %c1_48 = arith.constant 1 : index
    %c20_49 = arith.constant 20 : index
    %47 = vector.load %arg6[%c1_48, %c20_49] : memref<3x1024xf32, #tpu.memory_space<vmem>>, vector<1x512xf32>
    %c1_50 = arith.constant 1 : index
    %c21_51 = arith.constant 21 : index
    %48 = vector.load %arg6[%c1_50, %c21_51] : memref<3x1024xf32, #tpu.memory_space<vmem>>, vector<1x512xf32>
    %c1_52 = arith.constant 1 : index
    %c22_53 = arith.constant 22 : index
    %49 = vector.load %arg6[%c1_52, %c22_53] : memref<3x1024xf32, #tpu.memory_space<vmem>>, vector<1x512xf32>
    %c1_54 = arith.constant 1 : index
    %c23_55 = arith.constant 23 : index
    %50 = vector.load %arg6[%c1_54, %c23_55] : memref<3x1024xf32, #tpu.memory_space<vmem>>, vector<1x512xf32>
    %c1_56 = arith.constant 1 : index
    %c24_57 = arith.constant 24 : index
    %51 = vector.load %arg6[%c1_56, %c24_57] : memref<3x1024xf32, #tpu.memory_space<vmem>>, vector<1x512xf32>
    %c1_58 = arith.constant 1 : index
    %c40_59 = arith.constant 40 : index
    %52 = vector.load %arg6[%c1_58, %c40_59] : memref<3x1024xf32, #tpu.memory_space<vmem>>, vector<1x512xf32>
    %c1_60 = arith.constant 1 : index
    %c41_61 = arith.constant 41 : index
    %53 = vector.load %arg6[%c1_60, %c41_61] : memref<3x1024xf32, #tpu.memory_space<vmem>>, vector<1x512xf32>
    %c1_62 = arith.constant 1 : index
    %c42_63 = arith.constant 42 : index
    %54 = vector.load %arg6[%c1_62, %c42_63] : memref<3x1024xf32, #tpu.memory_space<vmem>>, vector<1x512xf32>
    %c1_64 = arith.constant 1 : index
    %c43_65 = arith.constant 43 : index
    %55 = vector.load %arg6[%c1_64, %c43_65] : memref<3x1024xf32, #tpu.memory_space<vmem>>, vector<1x512xf32>
    %c1_66 = arith.constant 1 : index
    %c44_67 = arith.constant 44 : index
    %56 = vector.load %arg6[%c1_66, %c44_67] : memref<3x1024xf32, #tpu.memory_space<vmem>>, vector<1x512xf32>
    %c1_68 = arith.constant 1 : index
    %c60_69 = arith.constant 60 : index
    %57 = vector.load %arg6[%c1_68, %c60_69] : memref<3x1024xf32, #tpu.memory_space<vmem>>, vector<1x512xf32>
    %c1_70 = arith.constant 1 : index
    %c61_71 = arith.constant 61 : index
    %58 = vector.load %arg6[%c1_70, %c61_71] : memref<3x1024xf32, #tpu.memory_space<vmem>>, vector<1x512xf32>
    %c1_72 = arith.constant 1 : index
    %c62_73 = arith.constant 62 : index
    %59 = vector.load %arg6[%c1_72, %c62_73] : memref<3x1024xf32, #tpu.memory_space<vmem>>, vector<1x512xf32>
    %c1_74 = arith.constant 1 : index
    %c63_75 = arith.constant 63 : index
    %60 = vector.load %arg6[%c1_74, %c63_75] : memref<3x1024xf32, #tpu.memory_space<vmem>>, vector<1x512xf32>
    %c1_76 = arith.constant 1 : index
    %c64_77 = arith.constant 64 : index
    %61 = vector.load %arg6[%c1_76, %c64_77] : memref<3x1024xf32, #tpu.memory_space<vmem>>, vector<1x512xf32>
    %c1_78 = arith.constant 1 : index
    %c80_79 = arith.constant 80 : index
    %62 = vector.load %arg6[%c1_78, %c80_79] : memref<3x1024xf32, #tpu.memory_space<vmem>>, vector<1x512xf32>
    %c1_80 = arith.constant 1 : index
    %c81_81 = arith.constant 81 : index
    %63 = vector.load %arg6[%c1_80, %c81_81] : memref<3x1024xf32, #tpu.memory_space<vmem>>, vector<1x512xf32>
    %c1_82 = arith.constant 1 : index
    %c82_83 = arith.constant 82 : index
    %64 = vector.load %arg6[%c1_82, %c82_83] : memref<3x1024xf32, #tpu.memory_space<vmem>>, vector<1x512xf32>
    %c1_84 = arith.constant 1 : index
    %c83_85 = arith.constant 83 : index
    %65 = vector.load %arg6[%c1_84, %c83_85] : memref<3x1024xf32, #tpu.memory_space<vmem>>, vector<1x512xf32>
    %c1_86 = arith.constant 1 : index
    %c84_87 = arith.constant 84 : index
    %66 = vector.load %arg6[%c1_86, %c84_87] : memref<3x1024xf32, #tpu.memory_space<vmem>>, vector<1x512xf32>
    %67 = tpu.concatenate %42, %43, %44, %45, %46, %47, %48, %49, %50, %51, %52, %53, %54, %55, %56, %57 in 0 : vector<1x512xf32>, vector<1x512xf32>, vector<1x512xf32>, vector<1x512xf32>, vector<1x512xf32>, vector<1x512xf32>, vector<1x512xf32>, vector<1x512xf32>, vector<1x512xf32>, vector<1x512xf32>, vector<1x512xf32>, vector<1x512xf32>, vector<1x512xf32>, vector<1x512xf32>, vector<1x512xf32>, vector<1x512xf32> -> vector<16x512xf32>
    %68 = tpu.concatenate %58, %59, %60, %61, %62, %63, %64, %65, %66, %7 in 0 : vector<1x512xf32>, vector<1x512xf32>, vector<1x512xf32>, vector<1x512xf32>, vector<1x512xf32>, vector<1x512xf32>, vector<1x512xf32>, vector<1x512xf32>, vector<1x512xf32>, vector<7x512xf32> -> vector<16x512xf32>
    %69 = tpu.concatenate %67, %68 in 0 : vector<16x512xf32>, vector<16x512xf32> -> vector<32x512xf32>
    %cst_88 = arith.constant dense<0.000000e+00> : vector<16x512xf32>
    %70 = tpu.matmul %6, %69, %cst_88 {dimension_numbers = #tpu.dot_dimension_numbers<[1], [0], [0], [1], [0, 0, 1, 1], [], []>} : vector<16x32xf32>, vector<32x512xf32>, vector<16x512xf32> -> vector<16x512xf32>
    %71 = vector.extract_strided_slice %70 {offsets = [0, 0], sizes = [8, 512], strides = [1, 1]} : vector<16x512xf32> to vector<8x512xf32>
    %72 = vector.extract_strided_slice %70 {offsets = [8, 0], sizes = [8, 512], strides = [1, 1]} : vector<16x512xf32> to vector<8x512xf32>
    %73 = arith.mulf %71, %72 : vector<8x512xf32>
    %74 = arith.addf %41, %73 : vector<8x512xf32>
    %c2_89 = arith.constant 2 : index
    %c0_90 = arith.constant 0 : index
    %75 = vector.load %arg6[%c2_89, %c0_90] : memref<3x1024xf32, #tpu.memory_space<vmem>>, vector<1x512xf32>
    %c2_91 = arith.constant 2 : index
    %c1_92 = arith.constant 1 : index
    %76 = vector.load %arg6[%c2_91, %c1_92] : memref<3x1024xf32, #tpu.memory_space<vmem>>, vector<1x512xf32>
    %c2_93 = arith.constant 2 : index
    %c2_94 = arith.constant 2 : index
    %77 = vector.load %arg6[%c2_93, %c2_94] : memref<3x1024xf32, #tpu.memory_space<vmem>>, vector<1x512xf32>
    %c2_95 = arith.constant 2 : index
    %c3_96 = arith.constant 3 : index
    %78 = vector.load %arg6[%c2_95, %c3_96] : memref<3x1024xf32, #tpu.memory_space<vmem>>, vector<1x512xf32>
    %c2_97 = arith.constant 2 : index
    %c4_98 = arith.constant 4 : index
    %79 = vector.load %arg6[%c2_97, %c4_98] : memref<3x1024xf32, #tpu.memory_space<vmem>>, vector<1x512xf32>
    %c2_99 = arith.constant 2 : index
    %c20_100 = arith.constant 20 : index
    %80 = vector.load %arg6[%c2_99, %c20_100] : memref<3x1024xf32, #tpu.memory_space<vmem>>, vector<1x512xf32>
    %c2_101 = arith.constant 2 : index
    %c21_102 = arith.constant 21 : index
    %81 = vector.load %arg6[%c2_101, %c21_102] : memref<3x1024xf32, #tpu.memory_space<vmem>>, vector<1x512xf32>
    %c2_103 = arith.constant 2 : index
    %c22_104 = arith.constant 22 : index
    %82 = vector.load %arg6[%c2_103, %c22_104] : memref<3x1024xf32, #tpu.memory_space<vmem>>, vector<1x512xf32>
    %c2_105 = arith.constant 2 : index
    %c23_106 = arith.constant 23 : index
    %83 = vector.load %arg6[%c2_105, %c23_106] : memref<3x1024xf32, #tpu.memory_space<vmem>>, vector<1x512xf32>
    %c2_107 = arith.constant 2 : index
    %c24_108 = arith.constant 24 : index
    %84 = vector.load %arg6[%c2_107, %c24_108] : memref<3x1024xf32, #tpu.memory_space<vmem>>, vector<1x512xf32>
    %c2_109 = arith.constant 2 : index
    %c40_110 = arith.constant 40 : index
    %85 = vector.load %arg6[%c2_109, %c40_110] : memref<3x1024xf32, #tpu.memory_space<vmem>>, vector<1x512xf32>
    %c2_111 = arith.constant 2 : index
    %c41_112 = arith.constant 41 : index
    %86 = vector.load %arg6[%c2_111, %c41_112] : memref<3x1024xf32, #tpu.memory_space<vmem>>, vector<1x512xf32>
    %c2_113 = arith.constant 2 : index
    %c42_114 = arith.constant 42 : index
    %87 = vector.load %arg6[%c2_113, %c42_114] : memref<3x1024xf32, #tpu.memory_space<vmem>>, vector<1x512xf32>
    %c2_115 = arith.constant 2 : index
    %c43_116 = arith.constant 43 : index
    %88 = vector.load %arg6[%c2_115, %c43_116] : memref<3x1024xf32, #tpu.memory_space<vmem>>, vector<1x512xf32>
    %c2_117 = arith.constant 2 : index
    %c44_118 = arith.constant 44 : index
    %89 = vector.load %arg6[%c2_117, %c44_118] : memref<3x1024xf32, #tpu.memory_space<vmem>>, vector<1x512xf32>
    %c2_119 = arith.constant 2 : index
    %c60_120 = arith.constant 60 : index
    %90 = vector.load %arg6[%c2_119, %c60_120] : memref<3x1024xf32, #tpu.memory_space<vmem>>, vector<1x512xf32>
    %c2_121 = arith.constant 2 : index
    %c61_122 = arith.constant 61 : index
    %91 = vector.load %arg6[%c2_121, %c61_122] : memref<3x1024xf32, #tpu.memory_space<vmem>>, vector<1x512xf32>
    %c2_123 = arith.constant 2 : index
    %c62_124 = arith.constant 62 : index
    %92 = vector.load %arg6[%c2_123, %c62_124] : memref<3x1024xf32, #tpu.memory_space<vmem>>, vector<1x512xf32>
    %c2_125 = arith.constant 2 : index
    %c63_126 = arith.constant 63 : index
    %93 = vector.load %arg6[%c2_125, %c63_126] : memref<3x1024xf32, #tpu.memory_space<vmem>>, vector<1x512xf32>
    %c2_127 = arith.constant 2 : index
    %c64_128 = arith.constant 64 : index
    %94 = vector.load %arg6[%c2_127, %c64_128] : memref<3x1024xf32, #tpu.memory_space<vmem>>, vector<1x512xf32>
    %c2_129 = arith.constant 2 : index
    %c80_130 = arith.constant 80 : index
    %95 = vector.load %arg6[%c2_129, %c80_130] : memref<3x1024xf32, #tpu.memory_space<vmem>>, vector<1x512xf32>
    %c2_131 = arith.constant 2 : index
    %c81_132 = arith.constant 81 : index
    %96 = vector.load %arg6[%c2_131, %c81_132] : memref<3x1024xf32, #tpu.memory_space<vmem>>, vector<1x512xf32>
    %c2_133 = arith.constant 2 : index
    %c82_134 = arith.constant 82 : index
    %97 = vector.load %arg6[%c2_133, %c82_134] : memref<3x1024xf32, #tpu.memory_space<vmem>>, vector<1x512xf32>
    %c2_135 = arith.constant 2 : index
    %c83_136 = arith.constant 83 : index
    %98 = vector.load %arg6[%c2_135, %c83_136] : memref<3x1024xf32, #tpu.memory_space<vmem>>, vector<1x512xf32>
    %c2_137 = arith.constant 2 : index
    %c84_138 = arith.constant 84 : index
    %99 = vector.load %arg6[%c2_137, %c84_138] : memref<3x1024xf32, #tpu.memory_space<vmem>>, vector<1x512xf32>
    %100 = tpu.concatenate %75, %76, %77, %78, %79, %80, %81, %82, %83, %84, %85, %86, %87, %88, %89, %90 in 0 : vector<1x512xf32>, vector<1x512xf32>, vector<1x512xf32>, vector<1x512xf32>, vector<1x512xf32>, vector<1x512xf32>, vector<1x512xf32>, vector<1x512xf32>, vector<1x512xf32>, vector<1x512xf32>, vector<1x512xf32>, vector<1x512xf32>, vector<1x512xf32>, vector<1x512xf32>, vector<1x512xf32>, vector<1x512xf32> -> vector<16x512xf32>
    %101 = tpu.concatenate %91, %92, %93, %94, %95, %96, %97, %98, %99, %7 in 0 : vector<1x512xf32>, vector<1x512xf32>, vector<1x512xf32>, vector<1x512xf32>, vector<1x512xf32>, vector<1x512xf32>, vector<1x512xf32>, vector<1x512xf32>, vector<1x512xf32>, vector<7x512xf32> -> vector<16x512xf32>
    %102 = tpu.concatenate %100, %101 in 0 : vector<16x512xf32>, vector<16x512xf32> -> vector<32x512xf32>
    %cst_139 = arith.constant dense<0.000000e+00> : vector<16x512xf32>
    %103 = tpu.matmul %6, %102, %cst_139 {dimension_numbers = #tpu.dot_dimension_numbers<[1], [0], [0], [1], [0, 0, 1, 1], [], []>} : vector<16x32xf32>, vector<32x512xf32>, vector<16x512xf32> -> vector<16x512xf32>
    %104 = vector.extract_strided_slice %103 {offsets = [0, 0], sizes = [8, 512], strides = [1, 1]} : vector<16x512xf32> to vector<8x512xf32>
    %105 = vector.extract_strided_slice %103 {offsets = [8, 0], sizes = [8, 512], strides = [1, 1]} : vector<16x512xf32> to vector<8x512xf32>
    %106 = arith.mulf %104, %105 : vector<8x512xf32>
    %107 = arith.addf %74, %106 : vector<8x512xf32>
    %c0_140 = arith.constant 0 : index
    %c0_141 = arith.constant 0 : index
    %c0_142 = arith.constant 0 : index
    %108 = vector.load %arg5[%c0_140, %c0_141, %c0_142] : memref<1x8x512xf32, #tpu.memory_space<vmem>>, vector<1x8x512xf32>
    %109 = vector.shape_cast %108 : vector<1x8x512xf32> to vector<8x512xf32>
    %110 = vector.shape_cast %107 : vector<8x512xf32> to vector<1x8x512xf32>
    tpu.vector_store %arg5[%c0_140, %c0_141, %c0_142], %110 {strides = array<i32>} : memref<1x8x512xf32, #tpu.memory_space<vmem>>, vector<1x8x512xf32>,
    return
  }
  func.func @transform_0(%arg0: i32, %arg1: i32) -> (i32, i32, i32) {
    %c0_i32 = arith.constant 0 : i32
    %c0_i32_0 = arith.constant 0 : i32
    return %arg0, %c0_i32, %arg1 : i32, i32, i32
  }
  func.func @transform_1(%arg0: i32, %arg1: i32) -> (i32, i32, i32) {
    %c1_i32 = arith.constant 1 : i32
    %0 = arith.addi %arg1, %c1_i32 : i32
    %c0_i32 = arith.constant 0 : i32
    %c0_i32_0 = arith.constant 0 : i32
    return %arg0, %c0_i32, %0 : i32, i32, i32
  }
  func.func @transform_2(%arg0: i32, %arg1: i32) -> (i32, i32) {
    %c0_i32 = arith.constant 0 : i32
    %c0_i32_0 = arith.constant 0 : i32
    %c0_i32_1 = arith.constant 0 : i32
    return %c0_i32, %c0_i32_0 : i32, i32
  }
  func.func @transform_3(%arg0: i32, %arg1: i32) -> (i32, i32, i32) {
    %c0_i32 = arith.constant 0 : i32
    %c0_i32_0 = arith.constant 0 : i32
    return %arg0, %c0_i32, %arg1 : i32, i32, i32
  }
}

</mosaic_0001>

<llo_original>
// kernel: tpu_custom_call.1
$region0: #{tpu_custom_call.1}
  #allocation0 [shape = 'u32[]', space=smem, size = 0x4, offset = 0x4, fixed_abs, tag = 'smem constant byte address 0x4 - core index']
  #allocation1 [shape = 'u32[144,128]{1,0:T(1,128)}', space=vmem, size = 0x12000, scoped, tag = 'internal scratch']
  #allocation2 [shape = 'f32[3,1024]{1,0:T(4,128)}', space=vmem, size = 0x4000, scoped, tag = 'scratch operand']
  %s0 = inlined_call_operand.vmem [shape: f32[2,3,1040], index: 0, kind: input, shape index: {}]
  %s1 = inlined_call_operand.vmem [shape: f32[2,3,1040], index: 1, kind: input, shape index: {}]
  %s2 = inlined_call_operand.vmem [shape: f32[16,32], index: 2, kind: input, shape index: {}]
  %s3 = inlined_call_operand.hbm [shape: f32[2,8,512], index: 3, kind: output, shape index: {}]
  %s4 = sld [smem:[#allocation0]]
  $region45: #{tpu_custom_call.1} parent=0
    _
  %s6 = ssub.s32 1, %s4
  %s7 = scalar_select 0, %s6, %s4
  $region1: #{tpu_custom_call.1} parent=0
    #allocation3 [shape = 'u8[32768]{0}', space=vmem, size = 0x8000, scoped, tag = 'output window, operand 0']
    #allocation4 [shape = 's32[2]{0}', space=sflag, size = 0x8, scoped, tag = 'scoped memory for tpu_custom_call.1']
    %8 = vsyncpa [#allocation4], 0
    %s9 = scalar_lea.sflag [#allocation4], 1
    %10 = vsyncpa %s9, 0
    loop: start=0, step=1, limit=4
    $region2: #{tpu_custom_call.1} parent=1 // loop_pre_header
      _
    $region3: #{tpu_custom_call.1} parent=1 // loop_header
      %s12 = sphi 0, %s16
      %p13 = scmp.ge.s32.totalorder %s12, 4
      %s19 = sphi 0, %s31
      %s20 = sphi 0, %s27
      %s21 = sphi 0, %s19
      %s22 = sphi 0, %s20
      %s23 = sphi 0, %s21
      %s24 = sphi 0, %s22
      %s36 = sphi 0, %s38
      %s39 = sphi 0, %s36
      %s40 = sphi 0, %s39
      %s56 = sphi 0, %s40
      %s66 = sphi 0, %s68
      %s69 = sphi 0, %s66
      %s70 = sphi 0, %s69
      %s86 = sphi 0, %s70
      %s90 = sphi 0, %s90
      %s92 = sphi 0, %s90
      %s93 = sphi 0, %s92
      %s107 = sphi 0, %s93
      %s115 = sphi 0, %s117
      %s118 = sphi 0, %s115
      %s119 = sphi 0, %s118
      %s135 = sphi 0, %s119
    $region4: #{tpu_custom_call.1} parent=1 // loop_header_branch
      %15 = sbr.rel (%p13) target = $region8
    $region5: #{tpu_custom_call.1} parent=1 // loop_body
      %s17 = ssub.s32 %s12, 1
      %s18 = ssub.s32 %s12, 2
      %s25 = sadd.s32 1, %s20
      %p26 = scmp.ge.s32.totalorder %s25, 1
      %s27 = scalar_select %p26, 0, %s25
      %s28 = sadd.s32 1, %s19
      %s29 = scalar_select %p26, %s28, %s19
      %p30 = scmp.ge.s32.totalorder %s29, 2
      %s31 = scalar_select %p30, 0, %s29
      %s32 = ssub.s32 %s19, %s31
      %s33 = ssub.s32 %s20, %s27
      %s34 = sor.u32 %s32, %s33
      %p35 = scmp.eq.s32.totalorder %s34, 0
      %s37 = sadd.s32 %s36, 1
      %s38 = scalar_select %p35, %s36, %s37
      %p41 = pneg %p35
      %p42 = scmp.eq.s32.totalorder %s12, 1
      %p43 = por %p41, %p42
      %p44 = scmp.ne.s32.totalorder %s36, %s39
      %p45 = scmp.eq.s32.totalorder %s12, 0
      %p46 = por %p44, %p45
      %p47 = scmp.ne.s32.totalorder %s36, %s39
      %p48 = scmp.eq.s32.totalorder %s17, 1
      %p49 = por %p47, %p48
      %p50 = scmp.ne.s32.totalorder %s39, %s40
      %p51 = scmp.eq.s32.totalorder %s17, 0
      %p52 = por %p50, %p51
      %p53 = scmp.ne.s32.totalorder %s39, %s40
      %p54 = scmp.eq.s32.totalorder %s18, 1
      %p55 = por %p53, %p54
      %p57 = scmp.ne.s32.totalorder %s40, %s56
      %p58 = scmp.eq.s32.totalorder %s18, 0
      %p59 = por %p57, %p58
      %s60 = sadd.s32 %s20, 1
      %s61 = sadd.s32 %s27, 1
      %s62 = ssub.s32 %s19, %s31
      %s63 = ssub.s32 %s60, %s61
      %s64 = sor.u32 %s62, %s63
      %p65 = scmp.eq.s32.totalorder %s64, 0
      %s67 = sadd.s32 %s66, 1
      %s68 = scalar_select %p65, %s66, %s67
      %p71 = pneg %p65
      %p72 = scmp.eq.s32.totalorder %s12, 1
      %p73 = por %p71, %p72
      %p74 = scmp.ne.s32.totalorder %s66, %s69
      %p75 = scmp.eq.s32.totalorder %s12, 0
      %p76 = por %p74, %p75
      %p77 = scmp.ne.s32.totalorder %s66, %s69
      %p78 = scmp.eq.s32.totalorder %s17, 1
      %p79 = por %p77, %p78
      %p80 = scmp.ne.s32.totalorder %s69, %s70
      %p81 = scmp.eq.s32.totalorder %s17, 0
      %p82 = por %p80, %p81
      %p83 = scmp.ne.s32.totalorder %s69, %s70
      %p84 = scmp.eq.s32.totalorder %s18, 1
      %p85 = por %p83, %p84
      %p87 = scmp.ne.s32.totalorder %s70, %s86
      %p88 = scmp.eq.s32.totalorder %s18, 0
      %p89 = por %p87, %p88
      %s91 = sadd.s32 %s90, 1
      %p94 = scmp.eq.s32.totalorder %s12, 1
      %p95 = scmp.ne.s32.totalorder %s90, %s92
      %p96 = scmp.eq.s32.totalorder %s12, 0
      %p97 = por %p95, %p96
      %p98 = scmp.ne.s32.totalorder %s90, %s92
      %p99 = scmp.eq.s32.totalorder %s17, 1
      %p100 = por %p98, %p99
      %p101 = scmp.ne.s32.totalorder %s92, %s93
      %p102 = scmp.eq.s32.totalorder %s17, 0
      %p103 = por %p101, %p102
      %p104 = scmp.ne.s32.totalorder %s92, %s93
      %p105 = scmp.eq.s32.totalorder %s18, 1
      %p106 = por %p104, %p105
      %p108 = scmp.ne.s32.totalorder %s93, %s107
      %p109 = scmp.eq.s32.totalorder %s18, 0
      %p110 = por %p108, %p109
      %s111 = ssub.s32 %s19, %s31
      %s112 = ssub.s32 %s20, %s27
      %s113 = sor.u32 %s111, %s112
      %p114 = scmp.eq.s32.totalorder %s113, 0
      %s116 = sadd.s32 %s115, 1
      %s117 = scalar_select %p114, %s115, %s116
      %p120 = pneg %p114
      %p121 = scmp.eq.s32.totalorder %s12, 1
      %p122 = por %p120, %p121
      %p123 = scmp.ne.s32.totalorder %s115, %s118
      %p124 = scmp.eq.s32.totalorder %s12, 0
      %p125 = por %p123, %p124
      %p126 = scmp.ne.s32.totalorder %s115, %s118
      %p127 = scmp.eq.s32.totalorder %s17, 1
      %p128 = por %p126, %p127
      %p129 = scmp.ne.s32.totalorder %s118, %s119
      %p130 = scmp.eq.s32.totalorder %s17, 0
      %p131 = por %p129, %p130
      %p132 = scmp.ne.s32.totalorder %s118, %s119
      %p133 = scmp.eq.s32.totalorder %s18, 1
      %p134 = por %p132, %p133
      %p136 = scmp.ne.s32.totalorder %s119, %s135
      %p137 = scmp.eq.s32.totalorder %s18, 0
      %p138 = por %p136, %p137
      %p139 = scmp.le.s32.totalorder 1, %s12
      %p140 = scmp.lt.s32.totalorder %s12, 3
      %p141 = pnand %p139, %p140
      %p142 = pneg %p141
      // Predicated region
      $region9: #{tpu_custom_call.1} parent=5 // pred_check
        _
      $region10: #{tpu_custom_call.1} parent=5 // pred_check_branch
        %144 = sbr.rel (%p141) target = $region12
      $region11: #{tpu_custom_call.1} parent=5 // pred_region
        %s145 = ssub.s32 %s12, 1
        // Predicated region
        $region13: #{tpu_custom_call.1} parent=11 // pred_check
          %p146 = pneg %p103
        $region14: #{tpu_custom_call.1} parent=11 // pred_check_branch
          %148 = sbr.rel (%p146) target = $region16
        $region15: #{tpu_custom_call.1} parent=11 // pred_region
          _
        $region16: #{tpu_custom_call.1} parent=11 // pred_fallthru
          _
      $region12: #{tpu_custom_call.1} parent=5 // pred_fallthru
        _
      %p149 = scmp.lt.s32.totalorder %s12, 2
      // Predicated region
      $region17: #{tpu_custom_call.1} parent=5 // pred_check
        %p150 = pneg %p149
      $region18: #{tpu_custom_call.1} parent=5 // pred_check_branch
        %152 = sbr.rel (%p150) target = $region20
      $region19: #{tpu_custom_call.1} parent=5 // pred_region
        // Predicated region
        $region21: #{tpu_custom_call.1} parent=19 // pred_check
          %p153 = pneg %p46
        $region22: #{tpu_custom_call.1} parent=19 // pred_check_branch
          %155 = sbr.rel (%p153) target = $region24
        $region23: #{tpu_custom_call.1} parent=19 // pred_region
          %s156 = smul.u32 4, %s20
          %s157 = ssub.s32 9, %s156
          %p158 = scmp.lt.s32.totalorder %s157, 4
          %s159 = scalar_select %p158, %s157, 4
          %s160 = smul.u32 64, %s159
          %p161 = scmp.lt.s32.totalorder %s19, 1
          %s162 = scalar_select %p161, %s19, 1
          %p163 = scmp.lt.s32.totalorder %s156, 8
          %s164 = scalar_select %p163, %s156, 8
          %s165 = smul.addr %s162, 9
          %s166 = sadd.s32 %s164, %s165
          %s167 = smul.addr %s166, 4
          %s168 = scalar_lea.vmem %s0, %s167
          %s169 = smul.u32 4, %s20
          %s170 = ssub.s32 9, %s169
          %p171 = scmp.lt.s32.totalorder %s170, 4
          %s172 = scalar_select %p171, %s170, 4
          %s173 = smul.u32 64, %s172
        $region24: #{tpu_custom_call.1} parent=19 // pred_fallthru
          _
        // Predicated region
        $region25: #{tpu_custom_call.1} parent=19 // pred_check
          %p174 = pneg %p76
        $region26: #{tpu_custom_call.1} parent=19 // pred_check_branch
          %176 = sbr.rel (%p174) target = $region28
        $region27: #{tpu_custom_call.1} parent=19 // pred_region
          %s177 = sadd.s32 %s20, 1
          %s178 = smul.u32 4, %s177
          %s179 = ssub.s32 9, %s178
          %p180 = scmp.lt.s32.totalorder %s179, 4
          %s181 = scalar_select %p180, %s179, 4
          %s182 = smul.u32 64, %s181
          %p183 = scmp.lt.s32.totalorder %s19, 1
          %s184 = scalar_select %p183, %s19, 1
          %p185 = scmp.lt.s32.totalorder %s178, 8
          %s186 = scalar_select %p185, %s178, 8
          %s187 = smul.addr %s184, 9
          %s188 = sadd.s32 %s186, %s187
          %s189 = smul.addr %s188, 4
          %s190 = scalar_lea.vmem %s1, %s189
          %s191 = sadd.s32 %s20, 1
          %s192 = smul.u32 4, %s191
          %s193 = ssub.s32 9, %s192
          %p194 = scmp.lt.s32.totalorder %s193, 4
          %s195 = scalar_select %p194, %s193, 4
          %s196 = smul.u32 64, %s195
        $region28: #{tpu_custom_call.1} parent=19 // pred_fallthru
          _
      $region20: #{tpu_custom_call.1} parent=5 // pred_fallthru
        _
      %p197 = scmp.le.s32.totalorder 1, %s12
      %p198 = scmp.lt.s32.totalorder %s12, 3
      %p199 = pnand %p197, %p198
      %p200 = pneg %p199
      // Predicated region
      $region29: #{tpu_custom_call.1} parent=5 // pred_check
        _
      $region30: #{tpu_custom_call.1} parent=5 // pred_check_branch
        %202 = sbr.rel (%p199) target = $region32
      $region31: #{tpu_custom_call.1} parent=5 // pred_region
        %s203 = ssub.s32 %s12, 1
        %s204 = smul.u32 4, %s22
        %s205 = ssub.s32 9, %s204
        %p206 = scmp.lt.s32.totalorder %s205, 4
        %s207 = scalar_select %p206, %s205, 4
        %s208 = smul.u32 64, %s207
        %p209 = scmp.lt.s32.totalorder %s21, 1
        %s210 = scalar_select %p209, %s21, 1
        %p211 = scmp.lt.s32.totalorder %s204, 8
        %s212 = scalar_select %p211, %s204, 8
        %s213 = smul.addr %s210, 9
        %s214 = sadd.s32 %s212, %s213
        %s215 = smul.addr %s214, 4
        %s216 = scalar_lea.vmem %s0, %s215
        %p217 = pneg %p52
        %p218 = pneg %p49
        %s219 = sadd.s32 %s22, 1
        %s220 = smul.u32 4, %s219
        %s221 = ssub.s32 9, %s220
        %p222 = scmp.lt.s32.totalorder %s221, 4
        %s223 = scalar_select %p222, %s221, 4
        %s224 = smul.u32 64, %s223
        %p225 = scmp.lt.s32.totalorder %s21, 1
        %s226 = scalar_select %p225, %s21, 1
        %p227 = scmp.lt.s32.totalorder %s220, 8
        %s228 = scalar_select %p227, %s220, 8
        %s229 = smul.addr %s226, 9
        %s230 = sadd.s32 %s228, %s229
        %s231 = smul.addr %s230, 4
        %s232 = scalar_lea.vmem %s1, %s231
        %p233 = pneg %p82
        %p234 = pneg %p79
        %p235 = pneg %p103
        %p236 = pneg %p100
        %p237 = pneg %p131
        %p238 = pneg %p128
        %s239 = sand.u32 %s118, 1
        %s240 = scalar_lea.sflag [#allocation4], %s239
        %s241 = sand.u32 %s118, 1
        %s242 = smul.addr %s241, 32
        %s243 = scalar_lea.vmem [#allocation3], %s242
        %s244 = smul.u32 4, %s22
        %s245 = ssub.s32 9, %s244
        %p246 = scmp.lt.s32.totalorder %s245, 4
        %s247 = scalar_select %p246, %s245, 4
        %s248 = smul.u32 64, %s247
        %p249 = scmp.lt.s32.totalorder %s21, 1
        %s250 = scalar_select %p249, %s21, 1
        %p251 = scmp.lt.s32.totalorder %s244, 8
        %s252 = scalar_select %p251, %s244, 8
        %s253 = smul.addr %s250, 9
        %s254 = sadd.s32 %s252, %s253
        %s255 = smul.addr %s254, 4
        %s256 = scalar_lea.vmem %s0, %s255
        %s257 = smul.u32 4, %s22
        %s258 = ssub.s32 9, %s257
        %p259 = scmp.lt.s32.totalorder %s258, 4
        %s260 = scalar_select %p259, %s258, 4
        %s261 = smul.u32 64, %s260
        %s262 = sadd.s32 %s22, 1
        %s263 = smul.u32 4, %s262
        %s264 = ssub.s32 9, %s263
        %p265 = scmp.lt.s32.totalorder %s264, 4
        %s266 = scalar_select %p265, %s264, 4
        %s267 = smul.u32 64, %s266
        %p268 = scmp.lt.s32.totalorder %s21, 1
        %s269 = scalar_select %p268, %s21, 1
        %p270 = scmp.lt.s32.totalorder %s263, 8
        %s271 = scalar_select %p270, %s263, 8
        %s272 = smul.addr %s269, 9
        %s273 = sadd.s32 %s271, %s272
        %s274 = smul.addr %s273, 4
        %s275 = scalar_lea.vmem %s1, %s274
        %s276 = sadd.s32 %s22, 1
        %s277 = smul.u32 4, %s276
        %s278 = ssub.s32 9, %s277
        %p279 = scmp.lt.s32.totalorder %s278, 4
        %s280 = scalar_select %p279, %s278, 4
        %s281 = smul.u32 64, %s280
        %s282 = smul.u32 4, %s22
        %v283 = vld [vmem:[%s256] sm:$0x77]
        %v284 = vld [vmem:[%s256 + $0x8] sm:$0x77]
        %285 = vst [vmem:[#allocation2] sm:$0x77] %v283
        %286 = vst [vmem:[#allocation2 + $0x8] sm:$0x77] %v284
        %v287 = vld [vmem:[%s275] sm:$0x77]
        %v288 = vld [vmem:[%s275 + $0x8] sm:$0x77]
        %289 = vst [vmem:[#allocation2 + $0x10] sm:$0x77] %v287
        %290 = vst [vmem:[#allocation2 + $0x18] sm:$0x77] %v288
        %v291 = vld [vmem:[%s2] sm:$0xff]
        %v292 = vld [vmem:[%s2 + $0x8] sm:$0xff]
        %v293 = vld [vmem:[#allocation2] ss:$4 sm:$0xf]
        %v294 = vld [vmem:[#allocation2] ss:$4 sm:$0x1f]
        %v296 = vlaneseq
        %v297 = vshrl.u32 %v296, 7
        %v298 = vsub.s32 0, %v297
        %v299 = vrot.slane %v293, %v298
        %v300 = vlaneseq
        %v301 = vshrl.u32 %v300, 7
        %v302 = vsub.s32 1, %v301
        %v303 = vrot.slane %v293, %v302
        %v304 = vlaneseq
        %v305 = vshrl.u32 %v304, 7
        %v306 = vsub.s32 2, %v305
        %v307 = vrot.slane %v293, %v306
        %v308 = vlaneseq
        %v309 = vshrl.u32 %v308, 7
        %v310 = vsub.s32 3, %v309
        %v311 = vrot.slane %v293, %v310
        %v317 = vlaneseq
        %v318 = vshrl.u32 %v317, 7
        %v319 = vsub.s32 0, %v318
        %v320 = vrot.slane %v294, %v319
        %v321 = vlaneseq
        %v322 = vshrl.u32 %v321, 7
        %v323 = vsub.s32 1, %v322
        %v324 = vrot.slane %v294, %v323
        %v325 = vlaneseq
        %v326 = vshrl.u32 %v325, 7
        %v327 = vsub.s32 2, %v326
        %v328 = vrot.slane %v294, %v327
        %v329 = vlaneseq
        %v330 = vshrl.u32 %v329, 7
        %v331 = vsub.s32 3, %v330
        %v332 = vrot.slane %v294, %v331
        %v333 = vlaneseq
        %v334 = vshrl.u32 %v333, 7
        %v335 = vsub.s32 4, %v334
        %v336 = vrot.slane %v294, %v335
        %337 = vrot.lane.b32.xlu0 %v320, 127
        %v338 = vpop.permute.xlu0 %337
        %339 = vrot.lane.b32.xlu0 %v324, 127
        %v340 = vpop.permute.xlu0 %339
        %341 = vrot.lane.b32.xlu0 %v328, 127
        %v342 = vpop.permute.xlu0 %341
        %343 = vrot.lane.b32.xlu0 %v332, 127
        %v344 = vpop.permute.xlu0 %343
        %345 = vrot.lane.b32.xlu0 %v336, 127
        %v346 = vpop.permute.xlu0 %345
        %vm347 = vcmask 1039360
        %v348 = vsel %vm347, %v338, %v340
        %v349 = vsel %vm347, %v340, %v342
        %v350 = vsel %vm347, %v342, %v344
        %v351 = vsel %vm347, %v344, %v346
        %356 = vrot.lane.b32.xlu0 %v320, 126
        %v357 = vpop.permute.xlu0 %356
        %358 = vrot.lane.b32.xlu0 %v324, 126
        %v359 = vpop.permute.xlu0 %358
        %360 = vrot.lane.b32.xlu0 %v328, 126
        %v361 = vpop.permute.xlu0 %360
        %362 = vrot.lane.b32.xlu0 %v332, 126
        %v363 = vpop.permute.xlu0 %362
        %364 = vrot.lane.b32.xlu0 %v336, 126
        %v365 = vpop.permute.xlu0 %364
        %vm366 = vcmask 1031168
        %v367 = vsel %vm366, %v357, %v359
        %v368 = vsel %vm366, %v359, %v361
        %v369 = vsel %vm366, %v361, %v363
        %v370 = vsel %vm366, %v363, %v365
        %375 = vrot.lane.b32.xlu0 %v320, 125
        %v376 = vpop.permute.xlu0 %375
        %377 = vrot.lane.b32.xlu0 %v324, 125
        %v378 = vpop.permute.xlu0 %377
        %379 = vrot.lane.b32.xlu0 %v328, 125
        %v380 = vpop.permute.xlu0 %379
        %381 = vrot.lane.b32.xlu0 %v332, 125
        %v382 = vpop.permute.xlu0 %381
        %383 = vrot.lane.b32.xlu0 %v336, 125
        %v384 = vpop.permute.xlu0 %383
        %vm385 = vcmask 1022976
        %v386 = vsel %vm385, %v376, %v378
        %v387 = vsel %vm385, %v378, %v380
        %v388 = vsel %vm385, %v380, %v382
        %v389 = vsel %vm385, %v382, %v384
        %394 = vrot.lane.b32.xlu0 %v320, 124
        %v395 = vpop.permute.xlu0 %394
        %396 = vrot.lane.b32.xlu0 %v324, 124
        %v397 = vpop.permute.xlu0 %396
        %398 = vrot.lane.b32.xlu0 %v328, 124
        %v399 = vpop.permute.xlu0 %398
        %400 = vrot.lane.b32.xlu0 %v332, 124
        %v401 = vpop.permute.xlu0 %400
        %402 = vrot.lane.b32.xlu0 %v336, 124
        %v403 = vpop.permute.xlu0 %402
        %vm404 = vcmask 1014784
        %v405 = vsel %vm404, %v395, %v397
        %v406 = vsel %vm404, %v397, %v399
        %v407 = vsel %vm404, %v399, %v401
        %v408 = vsel %vm404, %v401, %v403
        %413 = vrot.lane.b32.xlu0 %v320, 108
        %v414 = vpop.permute.xlu0 %413
        %415 = vrot.lane.b32.xlu0 %v324, 108
        %v416 = vpop.permute.xlu0 %415
        %417 = vrot.lane.b32.xlu0 %v328, 108
        %v418 = vpop.permute.xlu0 %417
        %419 = vrot.lane.b32.xlu0 %v332, 108
        %v420 = vpop.permute.xlu0 %419
        %421 = vrot.lane.b32.xlu0 %v336, 108
        %v422 = vpop.permute.xlu0 %421
        %vm423 = vcmask 883712
        %v424 = vsel %vm423, %v414, %v416
        %v425 = vsel %vm423, %v416, %v418
        %v426 = vsel %vm423, %v418, %v420
        %v427 = vsel %vm423, %v420, %v422
        %432 = vrot.lane.b32.xlu0 %v320, 107
        %v433 = vpop.permute.xlu0 %432
        %434 = vrot.lane.b32.xlu0 %v324, 107
        %v435 = vpop.permute.xlu0 %434
        %436 = vrot.lane.b32.xlu0 %v328, 107
        %v437 = vpop.permute.xlu0 %436
        %438 = vrot.lane.b32.xlu0 %v332, 107
        %v439 = vpop.permute.xlu0 %438
        %440 = vrot.lane.b32.xlu0 %v336, 107
        %v441 = vpop.permute.xlu0 %440
        %vm442 = vcmask 875520
        %v443 = vsel %vm442, %v433, %v435
        %v444 = vsel %vm442, %v435, %v437
        %v445 = vsel %vm442, %v437, %v439
        %v446 = vsel %vm442, %v439, %v441
        %451 = vrot.lane.b32.xlu0 %v320, 106
        %v452 = vpop.permute.xlu0 %451
        %453 = vrot.lane.b32.xlu0 %v324, 106
        %v454 = vpop.permute.xlu0 %453
        %455 = vrot.lane.b32.xlu0 %v328, 106
        %v456 = vpop.permute.xlu0 %455
        %457 = vrot.lane.b32.xlu0 %v332, 106
        %v458 = vpop.permute.xlu0 %457
        %459 = vrot.lane.b32.xlu0 %v336, 106
        %v460 = vpop.permute.xlu0 %459
        %vm461 = vcmask 867328
        %v462 = vsel %vm461, %v452, %v454
        %v463 = vsel %vm461, %v454, %v456
        %v464 = vsel %vm461, %v456, %v458
        %v465 = vsel %vm461, %v458, %v460
        %470 = vrot.lane.b32.xlu0 %v320, 105
        %v471 = vpop.permute.xlu0 %470
        %472 = vrot.lane.b32.xlu0 %v324, 105
        %v473 = vpop.permute.xlu0 %472
        %474 = vrot.lane.b32.xlu0 %v328, 105
        %v475 = vpop.permute.xlu0 %474
        %476 = vrot.lane.b32.xlu0 %v332, 105
        %v477 = vpop.permute.xlu0 %476
        %478 = vrot.lane.b32.xlu0 %v336, 105
        %v479 = vpop.permute.xlu0 %478
        %vm480 = vcmask 859136
        %v481 = vsel %vm480, %v471, %v473
        %v482 = vsel %vm480, %v473, %v475
        %v483 = vsel %vm480, %v475, %v477
        %v484 = vsel %vm480, %v477, %v479
        %489 = vrot.lane.b32.xlu0 %v320, 104
        %v490 = vpop.permute.xlu0 %489
        %491 = vrot.lane.b32.xlu0 %v324, 104
        %v492 = vpop.permute.xlu0 %491
        %493 = vrot.lane.b32.xlu0 %v328, 104
        %v494 = vpop.permute.xlu0 %493
        %495 = vrot.lane.b32.xlu0 %v332, 104
        %v496 = vpop.permute.xlu0 %495
        %497 = vrot.lane.b32.xlu0 %v336, 104
        %v498 = vpop.permute.xlu0 %497
        %vm499 = vcmask 850944
        %v500 = vsel %vm499, %v490, %v492
        %v501 = vsel %vm499, %v492, %v494
        %v502 = vsel %vm499, %v494, %v496
        %v503 = vsel %vm499, %v496, %v498
        %508 = vrot.lane.b32.xlu0 %v320, 88
        %v509 = vpop.permute.xlu0 %508
        %510 = vrot.lane.b32.xlu0 %v324, 88
        %v511 = vpop.permute.xlu0 %510
        %512 = vrot.lane.b32.xlu0 %v328, 88
        %v513 = vpop.permute.xlu0 %512
        %514 = vrot.lane.b32.xlu0 %v332, 88
        %v515 = vpop.permute.xlu0 %514
        %516 = vrot.lane.b32.xlu0 %v336, 88
        %v517 = vpop.permute.xlu0 %516
        %vm518 = vcmask 719872
        %v519 = vsel %vm518, %v509, %v511
        %v520 = vsel %vm518, %v511, %v513
        %v521 = vsel %vm518, %v513, %v515
        %v522 = vsel %vm518, %v515, %v517
        %527 = vrot.lane.b32.xlu0 %v320, 87
        %v528 = vpop.permute.xlu0 %527
        %529 = vrot.lane.b32.xlu0 %v324, 87
        %v530 = vpop.permute.xlu0 %529
        %531 = vrot.lane.b32.xlu0 %v328, 87
        %v532 = vpop.permute.xlu0 %531
        %533 = vrot.lane.b32.xlu0 %v332, 87
        %v534 = vpop.permute.xlu0 %533
        %535 = vrot.lane.b32.xlu0 %v336, 87
        %v536 = vpop.permute.xlu0 %535
        %vm537 = vcmask 711680
        %v538 = vsel %vm537, %v528, %v530
        %v539 = vsel %vm537, %v530, %v532
        %v540 = vsel %vm537, %v532, %v534
        %v541 = vsel %vm537, %v534, %v536
        %546 = vrot.lane.b32.xlu0 %v320, 86
        %v547 = vpop.permute.xlu0 %546
        %548 = vrot.lane.b32.xlu0 %v324, 86
        %v549 = vpop.permute.xlu0 %548
        %550 = vrot.lane.b32.xlu0 %v328, 86
        %v551 = vpop.permute.xlu0 %550
        %552 = vrot.lane.b32.xlu0 %v332, 86
        %v553 = vpop.permute.xlu0 %552
        %554 = vrot.lane.b32.xlu0 %v336, 86
        %v555 = vpop.permute.xlu0 %554
        %vm556 = vcmask 703488
        %v557 = vsel %vm556, %v547, %v549
        %v558 = vsel %vm556, %v549, %v551
        %v559 = vsel %vm556, %v551, %v553
        %v560 = vsel %vm556, %v553, %v555
        %565 = vrot.lane.b32.xlu0 %v320, 85
        %v566 = vpop.permute.xlu0 %565
        %567 = vrot.lane.b32.xlu0 %v324, 85
        %v568 = vpop.permute.xlu0 %567
        %569 = vrot.lane.b32.xlu0 %v328, 85
        %v570 = vpop.permute.xlu0 %569
        %571 = vrot.lane.b32.xlu0 %v332, 85
        %v572 = vpop.permute.xlu0 %571
        %573 = vrot.lane.b32.xlu0 %v336, 85
        %v574 = vpop.permute.xlu0 %573
        %vm575 = vcmask 695296
        %v576 = vsel %vm575, %v566, %v568
        %v577 = vsel %vm575, %v568, %v570
        %v578 = vsel %vm575, %v570, %v572
        %v579 = vsel %vm575, %v572, %v574
        %584 = vrot.lane.b32.xlu0 %v320, 84
        %v585 = vpop.permute.xlu0 %584
        %586 = vrot.lane.b32.xlu0 %v324, 84
        %v587 = vpop.permute.xlu0 %586
        %588 = vrot.lane.b32.xlu0 %v328, 84
        %v589 = vpop.permute.xlu0 %588
        %590 = vrot.lane.b32.xlu0 %v332, 84
        %v591 = vpop.permute.xlu0 %590
        %592 = vrot.lane.b32.xlu0 %v336, 84
        %v593 = vpop.permute.xlu0 %592
        %vm594 = vcmask 687104
        %v595 = vsel %vm594, %v585, %v587
        %v596 = vsel %vm594, %v587, %v589
        %v597 = vsel %vm594, %v589, %v591
        %v598 = vsel %vm594, %v591, %v593
        %603 = vrot.lane.b32.xlu0 %v320, 68
        %v604 = vpop.permute.xlu0 %603
        %605 = vrot.lane.b32.xlu0 %v324, 68
        %v606 = vpop.permute.xlu0 %605
        %607 = vrot.lane.b32.xlu0 %v328, 68
        %v608 = vpop.permute.xlu0 %607
        %609 = vrot.lane.b32.xlu0 %v332, 68
        %v610 = vpop.permute.xlu0 %609
        %611 = vrot.lane.b32.xlu0 %v336, 68
        %v612 = vpop.permute.xlu0 %611
        %vm613 = vcmask 556032
        %v614 = vsel %vm613, %v604, %v606
        %v615 = vsel %vm613, %v606, %v608
        %v616 = vsel %vm613, %v608, %v610
        %v617 = vsel %vm613, %v610, %v612
        %vm622 = vcmask 1040384
        %v623 = vsel %vm622, %v299, %v348
        %v624 = vsel %vm622, %v303, %v349
        %v625 = vsel %vm622, %v307, %v350
        %v626 = vsel %vm622, %v311, %v351
        %vm627 = vcmask 1041408
        %v628 = vsel %vm627, %v623, %v367
        %v629 = vsel %vm627, %v624, %v368
        %v630 = vsel %vm627, %v625, %v369
        %v631 = vsel %vm627, %v626, %v370
        %vm632 = vcmask 1042432
        %v633 = vsel %vm632, %v628, %v386
        %v634 = vsel %vm632, %v629, %v387
        %v635 = vsel %vm632, %v630, %v388
        %v636 = vsel %vm632, %v631, %v389
        %vm637 = vcmask 1043456
        %v638 = vsel %vm637, %v633, %v405
        %v639 = vsel %vm637, %v634, %v406
        %v640 = vsel %vm637, %v635, %v407
        %v641 = vsel %vm637, %v636, %v408
        %vm642 = vcmask 1044480
        %v643 = vsel %vm642, %v638, %v424
        %v644 = vsel %vm642, %v639, %v425
        %v645 = vsel %vm642, %v640, %v426
        %v646 = vsel %vm642, %v641, %v427
        %vm647 = vcmask 1045504
        %v648 = vsel %vm647, %v643, %v443
        %v649 = vsel %vm647, %v644, %v444
        %v650 = vsel %vm647, %v645, %v445
        %v651 = vsel %vm647, %v646, %v446
        %vm652 = vcmask 1046528
        %v653 = vsel %vm652, %v648, %v462
        %v654 = vsel %vm652, %v649, %v463
        %v655 = vsel %vm652, %v650, %v464
        %v656 = vsel %vm652, %v651, %v465
        %v657 = vsel %vm622, %v481, %v500
        %v658 = vsel %vm622, %v482, %v501
        %v659 = vsel %vm622, %v483, %v502
        %v660 = vsel %vm622, %v484, %v503
        %v661 = vsel %vm627, %v657, %v519
        %v662 = vsel %vm627, %v658, %v520
        %v663 = vsel %vm627, %v659, %v521
        %v664 = vsel %vm627, %v660, %v522
        %v665 = vsel %vm632, %v661, %v538
        %v666 = vsel %vm632, %v662, %v539
        %v667 = vsel %vm632, %v663, %v540
        %v668 = vsel %vm632, %v664, %v541
        %v669 = vsel %vm637, %v665, %v557
        %v670 = vsel %vm637, %v666, %v558
        %v671 = vsel %vm637, %v667, %v559
        %v672 = vsel %vm637, %v668, %v560
        %v673 = vsel %vm642, %v669, %v576
        %v674 = vsel %vm642, %v670, %v577
        %v675 = vsel %vm642, %v671, %v578
        %v676 = vsel %vm642, %v672, %v579
        %v677 = vsel %vm647, %v673, %v595
        %v678 = vsel %vm647, %v674, %v596
        %v679 = vsel %vm647, %v675, %v597
        %v680 = vsel %vm647, %v676, %v598
        %v681 = vsel %vm652, %v677, %v614
        %v682 = vsel %vm652, %v678, %v615
        %v683 = vsel %vm652, %v679, %v616
        %v684 = vsel %vm652, %v680, %v617
        %693 = vrot.lane.b32.xlu0 %v320, 109
        %v694 = vpop.permute.xlu0 %693
        %695 = vrot.lane.b32.xlu0 %v324, 109
        %v696 = vpop.permute.xlu0 %695
        %697 = vrot.lane.b32.xlu0 %v328, 109
        %v698 = vpop.permute.xlu0 %697
        %699 = vrot.lane.b32.xlu0 %v332, 109
        %v700 = vpop.permute.xlu0 %699
        %701 = vrot.lane.b32.xlu0 %v336, 109
        %v702 = vpop.permute.xlu0 %701
        %vm703 = vcmask 891904
        %v704 = vsel %vm703, %v694, %v696
        %v705 = vsel %vm703, %v696, %v698
        %v706 = vsel %vm703, %v698, %v700
        %v707 = vsel %vm703, %v700, %v702
        %v717 = vsel %vm622, %v320, %v348
        %v718 = vsel %vm622, %v324, %v349
        %v719 = vsel %vm622, %v328, %v350
        %v720 = vsel %vm622, %v332, %v351
        %v721 = vsel %vm622, %v336, %v346
        %v722 = vsel %vm627, %v717, %v367
        %v723 = vsel %vm627, %v718, %v368
        %v724 = vsel %vm627, %v719, %v369
        %v725 = vsel %vm627, %v720, %v370
        %v726 = vsel %vm627, %v721, %v365
        %v727 = vsel %vm632, %v722, %v386
        %v728 = vsel %vm632, %v723, %v387
        %v729 = vsel %vm632, %v724, %v388
        %v730 = vsel %vm632, %v725, %v389
        %v731 = vsel %vm632, %v726, %v384
        %v732 = vsel %vm637, %v727, %v704
        %v733 = vsel %vm637, %v728, %v705
        %v734 = vsel %vm637, %v729, %v706
        %v735 = vsel %vm637, %v730, %v707
        %v736 = vsel %vm637, %v731, %v702
        %v737 = vsel %vm642, %v732, %v424
        %v738 = vsel %vm642, %v733, %v425
        %v739 = vsel %vm642, %v734, %v426
        %v740 = vsel %vm642, %v735, %v427
        %v741 = vsel %vm642, %v736, %v422
        %v742 = vsel %vm647, %v737, %v443
        %v743 = vsel %vm647, %v738, %v444
        %v744 = vsel %vm647, %v739, %v445
        %v745 = vsel %vm647, %v740, %v446
        %v746 = vsel %vm647, %v741, %v441
        %v747 = vsel %vm652, %v742, %v462
        %v748 = vsel %vm652, %v743, %v463
        %v749 = vsel %vm652, %v744, %v464
        %v750 = vsel %vm652, %v745, %v465
        %v751 = vsel %vm652, %v746, %v460
        %v752 = vsel %vm622, %v481, 0.0
        %v753 = vsel %vm622, %v482, 0.0
        %v754 = vsel %vm622, %v483, 0.0
        %v755 = vsel %vm622, %v484, 0.0
        %v756 = vsel %vm622, %v479, 0.0
        %767 = vrot.lane.b32.xlu0 %v747, 67
        %v768 = vpop.permute.xlu0 %767
        %769 = vrot.lane.b32.xlu0 %v748, 67
        %v770 = vpop.permute.xlu0 %769
        %771 = vrot.lane.b32.xlu0 %v749, 67
        %v772 = vpop.permute.xlu0 %771
        %773 = vrot.lane.b32.xlu0 %v750, 67
        %v774 = vpop.permute.xlu0 %773
        %775 = vrot.lane.b32.xlu0 %v751, 67
        %v776 = vpop.permute.xlu0 %775
        %777 = vrot.lane.b32.xlu0 %v752, 67
        %v778 = vpop.permute.xlu0 %777
        %779 = vrot.lane.b32.xlu0 %v753, 67
        %v780 = vpop.permute.xlu0 %779
        %781 = vrot.lane.b32.xlu0 %v754, 67
        %v782 = vpop.permute.xlu0 %781
        %783 = vrot.lane.b32.xlu0 %v755, 67
        %v784 = vpop.permute.xlu0 %783
        %785 = vrot.lane.b32.xlu0 %v756, 67
        %v786 = vpop.permute.xlu0 %785
        %vm787 = vcmask 547840
        %v788 = vsel %vm787, %v768, %v770
        %v789 = vsel %vm787, %v770, %v772
        %v790 = vsel %vm787, %v772, %v774
        %v791 = vsel %vm787, %v774, %v776
        %v792 = vsel %vm787, %v778, %v780
        %v793 = vsel %vm787, %v780, %v782
        %v794 = vsel %vm787, %v782, %v784
        %v795 = vsel %vm787, %v784, %v786
        %vm804 = vcmask 261120
        %v806 = vsel %vm804, %v291, 0
        %v809 = vsel %vm804, %v292, 0
        %811 = vmatprep.subr.mxu0 0.0
        %812 = vmatpush1.msra.mxu0 0.0
        %813 = vmatprep.subr.mxu0 0.0
        %814 = vmatpush1.msra.mxu0 0.0
        %815 = vmatprep.subr.mxu0 0.0
        %816 = vmatpush1.msra.mxu0 0.0
        %817 = vmatprep.subr.mxu0 0.0
        %818 = vmatpush1.msra.mxu0 0.0
        %819 = vmatprep.subr.mxu0 0.0
        %820 = vmatpush1.msra.mxu0 0.0
        %821 = vmatprep.subr.mxu0 0.0
        %822 = vmatpush1.msra.mxu0 0.0
        %823 = vmatprep.subr.mxu0 0.0
        %824 = vmatpush1.msra.mxu0 0.0
        %825 = vmatprep.subr.mxu0 0.0
        %826 = vmatpush1.msra.mxu0 0.0
        %827 = vmatprep.subr.mxu0 0.0
        %828 = vmatpush1.msra.mxu0 0.0
        %829 = vmatprep.subr.mxu0 0.0
        %830 = vmatpush1.msra.mxu0 0.0
        %831 = vmatprep.subr.mxu0 0.0
        %832 = vmatpush1.msra.mxu0 0.0
        %833 = vmatprep.subr.mxu0 0.0
        %834 = vmatpush1.msra.mxu0 0.0
        %835 = vmatprep.subr.mxu0 %v793
        %836 = vmatpush1.msra.mxu0 %v792
        %837 = vmatprep.subr.mxu0 %v789
        %838 = vmatpush1.msra.mxu0 %v788
        %839 = vmatprep.subr.mxu0 %v682
        %840 = vmatpush1.msra.mxu0 %v681
        %841 = vmatprep.subr.mxu0 %v654
        %842 = vmatpush1.msra.mxu0 %v653
        %843 = vmatprep.subr.mxu0 0.0
        %844 = vmatpush2.msra.mxu0 0.0
        %845 = vmatprep.subr.mxu0 0.0
        %846 = vmatpush2.msra.mxu0 0.0
        %847 = vmatprep.subr.mxu0 0.0
        %848 = vmatpush2.msra.mxu0 0.0
        %849 = vmatprep.subr.mxu0 0.0
        %850 = vmatpush2.msra.mxu0 0.0
        %851 = vmatprep.subr.mxu0 0.0
        %852 = vmatpush2.msra.mxu0 0.0
        %853 = vmatprep.subr.mxu0 0.0
        %854 = vmatpush2.msra.mxu0 0.0
        %855 = vmatprep.subr.mxu0 0.0
        %856 = vmatpush2.msra.mxu0 0.0
        %857 = vmatprep.subr.mxu0 0.0
        %858 = vmatpush2.msra.mxu0 0.0
        %859 = vmatprep.subr.mxu0 0.0
        %860 = vmatpush2.msra.mxu0 0.0
        %861 = vmatprep.subr.mxu0 0.0
        %862 = vmatpush2.msra.mxu0 0.0
        %863 = vmatprep.subr.mxu0 0.0
        %864 = vmatpush2.msra.mxu0 0.0
        %865 = vmatprep.subr.mxu0 0.0
        %866 = vmatpush2.msra.mxu0 0.0
        %867 = vmatprep.subr.mxu0 0.0
        %868 = vmatpush2.msra.mxu0 0.0
        %869 = vmatprep.subr.mxu0 0.0
        %870 = vmatpush2.msra.mxu0 0.0
        %871 = vmatprep.subr.mxu0 0.0
        %872 = vmatpush2.msra.mxu0 0.0
        %873 = vmatprep.subr.mxu0 0.0
        %874 = vmatpush2.msra.mxu0 0.0
        %875 = vmatprep.mubr.f32.mxu0 0.0
        %876 = vmatmul.mubr.f32.gmra.mxu0 %v806
        %v877 = vpop.f32.mrf.mxu0
        %v878 = vadd.f32 0.0, %v877
        %v879 = vpop.f32.mrf.mxu0
        %v880 = vadd.f32 0.0, %v879
        %881 = vmatprep.mubr.f32.mxu0 0.0
        %882 = vmatmul.mubr.f32.gmra.mxu0 %v809
        %v883 = vpop.f32.mrf.mxu0
        %v884 = vadd.f32 0.0, %v883
        %v885 = vpop.f32.mrf.mxu0
        %v886 = vadd.f32 0.0, %v885
        %887 = vdwg.mxu0
        %888 = vmatprep.subr.mxu0 0.0
        %889 = vmatpush1.msra.mxu0 0.0
        %890 = vmatprep.subr.mxu0 0.0
        %891 = vmatpush1.msra.mxu0 0.0
        %892 = vmatprep.subr.mxu0 0.0
        %893 = vmatpush1.msra.mxu0 0.0
        %894 = vmatprep.subr.mxu0 0.0
        %895 = vmatpush1.msra.mxu0 0.0
        %896 = vmatprep.subr.mxu0 0.0
        %897 = vmatpush1.msra.mxu0 0.0
        %898 = vmatprep.subr.mxu0 0.0
        %899 = vmatpush1.msra.mxu0 0.0
        %900 = vmatprep.subr.mxu0 0.0
        %901 = vmatpush1.msra.mxu0 0.0
        %902 = vmatprep.subr.mxu0 0.0
        %903 = vmatpush1.msra.mxu0 0.0
        %904 = vmatprep.subr.mxu0 0.0
        %905 = vmatpush1.msra.mxu0 0.0
        %906 = vmatprep.subr.mxu0 0.0
        %907 = vmatpush1.msra.mxu0 0.0
        %908 = vmatprep.subr.mxu0 0.0
        %909 = vmatpush1.msra.mxu0 0.0
        %910 = vmatprep.subr.mxu0 0.0
        %911 = vmatpush1.msra.mxu0 0.0
        %912 = vmatprep.subr.mxu0 %v795
        %913 = vmatpush1.msra.mxu0 %v794
        %914 = vmatprep.subr.mxu0 %v791
        %915 = vmatpush1.msra.mxu0 %v790
        %916 = vmatprep.subr.mxu0 %v684
        %917 = vmatpush1.msra.mxu0 %v683
        %918 = vmatprep.subr.mxu0 %v656
        %919 = vmatpush1.msra.mxu0 %v655
        %920 = vmatprep.subr.mxu0 0.0
        %921 = vmatpush2.msra.mxu0 0.0
        %922 = vmatprep.subr.mxu0 0.0
        %923 = vmatpush2.msra.mxu0 0.0
        %924 = vmatprep.subr.mxu0 0.0
        %925 = vmatpush2.msra.mxu0 0.0
        %926 = vmatprep.subr.mxu0 0.0
        %927 = vmatpush2.msra.mxu0 0.0
        %928 = vmatprep.subr.mxu0 0.0
        %929 = vmatpush2.msra.mxu0 0.0
        %930 = vmatprep.subr.mxu0 0.0
        %931 = vmatpush2.msra.mxu0 0.0
        %932 = vmatprep.subr.mxu0 0.0
        %933 = vmatpush2.msra.mxu0 0.0
        %934 = vmatprep.subr.mxu0 0.0
        %935 = vmatpush2.msra.mxu0 0.0
        %936 = vmatprep.subr.mxu0 0.0
        %937 = vmatpush2.msra.mxu0 0.0
        %938 = vmatprep.subr.mxu0 0.0
        %939 = vmatpush2.msra.mxu0 0.0
        %940 = vmatprep.subr.mxu0 0.0
        %941 = vmatpush2.msra.mxu0 0.0
        %942 = vmatprep.subr.mxu0 0.0
        %943 = vmatpush2.msra.mxu0 0.0
        %944 = vmatprep.subr.mxu0 0.0
        %945 = vmatpush2.msra.mxu0 0.0
        %946 = vmatprep.subr.mxu0 0.0
        %947 = vmatpush2.msra.mxu0 0.0
        %948 = vmatprep.subr.mxu0 0.0
        %949 = vmatpush2.msra.mxu0 0.0
        %950 = vmatprep.subr.mxu0 0.0
        %951 = vmatpush2.msra.mxu0 0.0
        %952 = vmatprep.mubr.f32.mxu0 0.0
        %953 = vmatmul.mubr.f32.gmra.mxu0 %v806
        %v954 = vpop.f32.mrf.mxu0
        %v955 = vadd.f32 0.0, %v954
        %v956 = vpop.f32.mrf.mxu0
        %v957 = vadd.f32 0.0, %v956
        %958 = vmatprep.mubr.f32.mxu0 0.0
        %959 = vmatmul.mubr.f32.gmra.mxu0 %v809
        %v960 = vpop.f32.mrf.mxu0
        %v961 = vadd.f32 0.0, %v960
        %v962 = vpop.f32.mrf.mxu0
        %v963 = vadd.f32 0.0, %v962
        %964 = vdwg.mxu0
        %v965 = vmul.f32 %v878, %v884
        %v966 = vmul.f32 %v880, %v886
        %v967 = vmul.f32 %v955, %v961
        %v968 = vmul.f32 %v957, %v963
        %v969 = vadd.f32 %v965, 0.0
        %v970 = vadd.f32 %v966, 0.0
        %v971 = vadd.f32 %v967, 0.0
        %v972 = vadd.f32 %v968, 0.0
        %s973 = scalar_lea.vmem [#allocation2], 1
        %v974 = vld [vmem:[%s973] ss:$4 sm:$0xf]
        %v975 = vld [vmem:[%s973] ss:$4 sm:$0x1f]
        %v977 = vlaneseq
        %v978 = vshrl.u32 %v977, 7
        %v979 = vsub.s32 0, %v978
        %v980 = vrot.slane %v974, %v979
        %v981 = vlaneseq
        %v982 = vshrl.u32 %v981, 7
        %v983 = vsub.s32 1, %v982
        %v984 = vrot.slane %v974, %v983
        %v985 = vlaneseq
        %v986 = vshrl.u32 %v985, 7
        %v987 = vsub.s32 2, %v986
        %v988 = vrot.slane %v974, %v987
        %v989 = vlaneseq
        %v990 = vshrl.u32 %v989, 7
        %v991 = vsub.s32 3, %v990
        %v992 = vrot.slane %v974, %v991
        %v998 = vlaneseq
        %v999 = vshrl.u32 %v998, 7
        %v1000 = vsub.s32 0, %v999
        %v1001 = vrot.slane %v975, %v1000
        %v1002 = vlaneseq
        %v1003 = vshrl.u32 %v1002, 7
        %v1004 = vsub.s32 1, %v1003
        %v1005 = vrot.slane %v975, %v1004
        %v1006 = vlaneseq
        %v1007 = vshrl.u32 %v1006, 7
        %v1008 = vsub.s32 2, %v1007
        %v1009 = vrot.slane %v975, %v1008
        %v1010 = vlaneseq
        %v1011 = vshrl.u32 %v1010, 7
        %v1012 = vsub.s32 3, %v1011
        %v1013 = vrot.slane %v975, %v1012
        %v1014 = vlaneseq
        %v1015 = vshrl.u32 %v1014, 7
        %v1016 = vsub.s32 4, %v1015
        %v1017 = vrot.slane %v975, %v1016
        %1018 = vrot.lane.b32.xlu0 %v1001, 127
        %v1019 = vpop.permute.xlu0 %1018
        %1020 = vrot.lane.b32.xlu0 %v1005, 127
        %v1021 = vpop.permute.xlu0 %1020
        %1022 = vrot.lane.b32.xlu0 %v1009, 127
        %v1023 = vpop.permute.xlu0 %1022
        %1024 = vrot.lane.b32.xlu0 %v1013, 127
        %v1025 = vpop.permute.xlu0 %1024
        %1026 = vrot.lane.b32.xlu0 %v1017, 127
        %v1027 = vpop.permute.xlu0 %1026
        %v1028 = vsel %vm347, %v1019, %v1021
        %v1029 = vsel %vm347, %v1021, %v1023
        %v1030 = vsel %vm347, %v1023, %v1025
        %v1031 = vsel %vm347, %v1025, %v1027
        %1036 = vrot.lane.b32.xlu0 %v1001, 126
        %v1037 = vpop.permute.xlu0 %1036
        %1038 = vrot.lane.b32.xlu0 %v1005, 126
        %v1039 = vpop.permute.xlu0 %1038
        %1040 = vrot.lane.b32.xlu0 %v1009, 126
        %v1041 = vpop.permute.xlu0 %1040
        %1042 = vrot.lane.b32.xlu0 %v1013, 126
        %v1043 = vpop.permute.xlu0 %1042
        %1044 = vrot.lane.b32.xlu0 %v1017, 126
        %v1045 = vpop.permute.xlu0 %1044
        %v1046 = vsel %vm366, %v1037, %v1039
        %v1047 = vsel %vm366, %v1039, %v1041
        %v1048 = vsel %vm366, %v1041, %v1043
        %v1049 = vsel %vm366, %v1043, %v1045
        %1054 = vrot.lane.b32.xlu0 %v1001, 125
        %v1055 = vpop.permute.xlu0 %1054
        %1056 = vrot.lane.b32.xlu0 %v1005, 125
        %v1057 = vpop.permute.xlu0 %1056
        %1058 = vrot.lane.b32.xlu0 %v1009, 125
        %v1059 = vpop.permute.xlu0 %1058
        %1060 = vrot.lane.b32.xlu0 %v1013, 125
        %v1061 = vpop.permute.xlu0 %1060
        %1062 = vrot.lane.b32.xlu0 %v1017, 125
        %v1063 = vpop.permute.xlu0 %1062
        %v1064 = vsel %vm385, %v1055, %v1057
        %v1065 = vsel %vm385, %v1057, %v1059
        %v1066 = vsel %vm385, %v1059, %v1061
        %v1067 = vsel %vm385, %v1061, %v1063
        %1072 = vrot.lane.b32.xlu0 %v1001, 124
        %v1073 = vpop.permute.xlu0 %1072
        %1074 = vrot.lane.b32.xlu0 %v1005, 124
        %v1075 = vpop.permute.xlu0 %1074
        %1076 = vrot.lane.b32.xlu0 %v1009, 124
        %v1077 = vpop.permute.xlu0 %1076
        %1078 = vrot.lane.b32.xlu0 %v1013, 124
        %v1079 = vpop.permute.xlu0 %1078
        %1080 = vrot.lane.b32.xlu0 %v1017, 124
        %v1081 = vpop.permute.xlu0 %1080
        %v1082 = vsel %vm404, %v1073, %v1075
        %v1083 = vsel %vm404, %v1075, %v1077
        %v1084 = vsel %vm404, %v1077, %v1079
        %v1085 = vsel %vm404, %v1079, %v1081
        %1090 = vrot.lane.b32.xlu0 %v1001, 108
        %v1091 = vpop.permute.xlu0 %1090
        %1092 = vrot.lane.b32.xlu0 %v1005, 108
        %v1093 = vpop.permute.xlu0 %1092
        %1094 = vrot.lane.b32.xlu0 %v1009, 108
        %v1095 = vpop.permute.xlu0 %1094
        %1096 = vrot.lane.b32.xlu0 %v1013, 108
        %v1097 = vpop.permute.xlu0 %1096
        %1098 = vrot.lane.b32.xlu0 %v1017, 108
        %v1099 = vpop.permute.xlu0 %1098
        %v1100 = vsel %vm423, %v1091, %v1093
        %v1101 = vsel %vm423, %v1093, %v1095
        %v1102 = vsel %vm423, %v1095, %v1097
        %v1103 = vsel %vm423, %v1097, %v1099
        %1108 = vrot.lane.b32.xlu0 %v1001, 107
        %v1109 = vpop.permute.xlu0 %1108
        %1110 = vrot.lane.b32.xlu0 %v1005, 107
        %v1111 = vpop.permute.xlu0 %1110
        %1112 = vrot.lane.b32.xlu0 %v1009, 107
        %v1113 = vpop.permute.xlu0 %1112
        %1114 = vrot.lane.b32.xlu0 %v1013, 107
        %v1115 = vpop.permute.xlu0 %1114
        %1116 = vrot.lane.b32.xlu0 %v1017, 107
        %v1117 = vpop.permute.xlu0 %1116
        %v1118 = vsel %vm442, %v1109, %v1111
        %v1119 = vsel %vm442, %v1111, %v1113
        %v1120 = vsel %vm442, %v1113, %v1115
        %v1121 = vsel %vm442, %v1115, %v1117
        %1126 = vrot.lane.b32.xlu0 %v1001, 106
        %v1127 = vpop.permute.xlu0 %1126
        %1128 = vrot.lane.b32.xlu0 %v1005, 106
        %v1129 = vpop.permute.xlu0 %1128
        %1130 = vrot.lane.b32.xlu0 %v1009, 106
        %v1131 = vpop.permute.xlu0 %1130
        %1132 = vrot.lane.b32.xlu0 %v1013, 106
        %v1133 = vpop.permute.xlu0 %1132
        %1134 = vrot.lane.b32.xlu0 %v1017, 106
        %v1135 = vpop.permute.xlu0 %1134
        %v1136 = vsel %vm461, %v1127, %v1129
        %v1137 = vsel %vm461, %v1129, %v1131
        %v1138 = vsel %vm461, %v1131, %v1133
        %v1139 = vsel %vm461, %v1133, %v1135
        %1144 = vrot.lane.b32.xlu0 %v1001, 105
        %v1145 = vpop.permute.xlu0 %1144
        %1146 = vrot.lane.b32.xlu0 %v1005, 105
        %v1147 = vpop.permute.xlu0 %1146
        %1148 = vrot.lane.b32.xlu0 %v1009, 105
        %v1149 = vpop.permute.xlu0 %1148
        %1150 = vrot.lane.b32.xlu0 %v1013, 105
        %v1151 = vpop.permute.xlu0 %1150
        %1152 = vrot.lane.b32.xlu0 %v1017, 105
        %v1153 = vpop.permute.xlu0 %1152
        %v1154 = vsel %vm480, %v1145, %v1147
        %v1155 = vsel %vm480, %v1147, %v1149
        %v1156 = vsel %vm480, %v1149, %v1151
        %v1157 = vsel %vm480, %v1151, %v1153
        %1162 = vrot.lane.b32.xlu0 %v1001, 104
        %v1163 = vpop.permute.xlu0 %1162
        %1164 = vrot.lane.b32.xlu0 %v1005, 104
        %v1165 = vpop.permute.xlu0 %1164
        %1166 = vrot.lane.b32.xlu0 %v1009, 104
        %v1167 = vpop.permute.xlu0 %1166
        %1168 = vrot.lane.b32.xlu0 %v1013, 104
        %v1169 = vpop.permute.xlu0 %1168
        %1170 = vrot.lane.b32.xlu0 %v1017, 104
        %v1171 = vpop.permute.xlu0 %1170
        %v1172 = vsel %vm499, %v1163, %v1165
        %v1173 = vsel %vm499, %v1165, %v1167
        %v1174 = vsel %vm499, %v1167, %v1169
        %v1175 = vsel %vm499, %v1169, %v1171
        %1180 = vrot.lane.b32.xlu0 %v1001, 88
        %v1181 = vpop.permute.xlu0 %1180
        %1182 = vrot.lane.b32.xlu0 %v1005, 88
        %v1183 = vpop.permute.xlu0 %1182
        %1184 = vrot.lane.b32.xlu0 %v1009, 88
        %v1185 = vpop.permute.xlu0 %1184
        %1186 = vrot.lane.b32.xlu0 %v1013, 88
        %v1187 = vpop.permute.xlu0 %1186
        %1188 = vrot.lane.b32.xlu0 %v1017, 88
        %v1189 = vpop.permute.xlu0 %1188
        %v1190 = vsel %vm518, %v1181, %v1183
        %v1191 = vsel %vm518, %v1183, %v1185
        %v1192 = vsel %vm518, %v1185, %v1187
        %v1193 = vsel %vm518, %v1187, %v1189
        %1198 = vrot.lane.b32.xlu0 %v1001, 87
        %v1199 = vpop.permute.xlu0 %1198
        %1200 = vrot.lane.b32.xlu0 %v1005, 87
        %v1201 = vpop.permute.xlu0 %1200
        %1202 = vrot.lane.b32.xlu0 %v1009, 87
        %v1203 = vpop.permute.xlu0 %1202
        %1204 = vrot.lane.b32.xlu0 %v1013, 87
        %v1205 = vpop.permute.xlu0 %1204
        %1206 = vrot.lane.b32.xlu0 %v1017, 87
        %v1207 = vpop.permute.xlu0 %1206
        %v1208 = vsel %vm537, %v1199, %v1201
        %v1209 = vsel %vm537, %v1201, %v1203
        %v1210 = vsel %vm537, %v1203, %v1205
        %v1211 = vsel %vm537, %v1205, %v1207
        %1216 = vrot.lane.b32.xlu0 %v1001, 86
        %v1217 = vpop.permute.xlu0 %1216
        %1218 = vrot.lane.b32.xlu0 %v1005, 86
        %v1219 = vpop.permute.xlu0 %1218
        %1220 = vrot.lane.b32.xlu0 %v1009, 86
        %v1221 = vpop.permute.xlu0 %1220
        %1222 = vrot.lane.b32.xlu0 %v1013, 86
        %v1223 = vpop.permute.xlu0 %1222
        %1224 = vrot.lane.b32.xlu0 %v1017, 86
        %v1225 = vpop.permute.xlu0 %1224
        %v1226 = vsel %vm556, %v1217, %v1219
        %v1227 = vsel %vm556, %v1219, %v1221
        %v1228 = vsel %vm556, %v1221, %v1223
        %v1229 = vsel %vm556, %v1223, %v1225
        %1234 = vrot.lane.b32.xlu0 %v1001, 85
        %v1235 = vpop.permute.xlu0 %1234
        %1236 = vrot.lane.b32.xlu0 %v1005, 85
        %v1237 = vpop.permute.xlu0 %1236
        %1238 = vrot.lane.b32.xlu0 %v1009, 85
        %v1239 = vpop.permute.xlu0 %1238
        %1240 = vrot.lane.b32.xlu0 %v1013, 85
        %v1241 = vpop.permute.xlu0 %1240
        %1242 = vrot.lane.b32.xlu0 %v1017, 85
        %v1243 = vpop.permute.xlu0 %1242
        %v1244 = vsel %vm575, %v1235, %v1237
        %v1245 = vsel %vm575, %v1237, %v1239
        %v1246 = vsel %vm575, %v1239, %v1241
        %v1247 = vsel %vm575, %v1241, %v1243
        %1252 = vrot.lane.b32.xlu0 %v1001, 84
        %v1253 = vpop.permute.xlu0 %1252
        %1254 = vrot.lane.b32.xlu0 %v1005, 84
        %v1255 = vpop.permute.xlu0 %1254
        %1256 = vrot.lane.b32.xlu0 %v1009, 84
        %v1257 = vpop.permute.xlu0 %1256
        %1258 = vrot.lane.b32.xlu0 %v1013, 84
        %v1259 = vpop.permute.xlu0 %1258
        %1260 = vrot.lane.b32.xlu0 %v1017, 84
        %v1261 = vpop.permute.xlu0 %1260
        %v1262 = vsel %vm594, %v1253, %v1255
        %v1263 = vsel %vm594, %v1255, %v1257
        %v1264 = vsel %vm594, %v1257, %v1259
        %v1265 = vsel %vm594, %v1259, %v1261
        %1270 = vrot.lane.b32.xlu0 %v1001, 68
        %v1271 = vpop.permute.xlu0 %1270
        %1272 = vrot.lane.b32.xlu0 %v1005, 68
        %v1273 = vpop.permute.xlu0 %1272
        %1274 = vrot.lane.b32.xlu0 %v1009, 68
        %v1275 = vpop.permute.xlu0 %1274
        %1276 = vrot.lane.b32.xlu0 %v1013, 68
        %v1277 = vpop.permute.xlu0 %1276
        %1278 = vrot.lane.b32.xlu0 %v1017, 68
        %v1279 = vpop.permute.xlu0 %1278
        %v1280 = vsel %vm613, %v1271, %v1273
        %v1281 = vsel %vm613, %v1273, %v1275
        %v1282 = vsel %vm613, %v1275, %v1277
        %v1283 = vsel %vm613, %v1277, %v1279
        %v1288 = vsel %vm622, %v980, %v1028
        %v1289 = vsel %vm622, %v984, %v1029
        %v1290 = vsel %vm622, %v988, %v1030
        %v1291 = vsel %vm622, %v992, %v1031
        %v1292 = vsel %vm627, %v1288, %v1046
        %v1293 = vsel %vm627, %v1289, %v1047
        %v1294 = vsel %vm627, %v1290, %v1048
        %v1295 = vsel %vm627, %v1291, %v1049
        %v1296 = vsel %vm632, %v1292, %v1064
        %v1297 = vsel %vm632, %v1293, %v1065
        %v1298 = vsel %vm632, %v1294, %v1066
        %v1299 = vsel %vm632, %v1295, %v1067
        %v1300 = vsel %vm637, %v1296, %v1082
        %v1301 = vsel %vm637, %v1297, %v1083
        %v1302 = vsel %vm637, %v1298, %v1084
        %v1303 = vsel %vm637, %v1299, %v1085
        %v1304 = vsel %vm642, %v1300, %v1100
        %v1305 = vsel %vm642, %v1301, %v1101
        %v1306 = vsel %vm642, %v1302, %v1102
        %v1307 = vsel %vm642, %v1303, %v1103
        %v1308 = vsel %vm647, %v1304, %v1118
        %v1309 = vsel %vm647, %v1305, %v1119
        %v1310 = vsel %vm647, %v1306, %v1120
        %v1311 = vsel %vm647, %v1307, %v1121
        %v1312 = vsel %vm652, %v1308, %v1136
        %v1313 = vsel %vm652, %v1309, %v1137
        %v1314 = vsel %vm652, %v1310, %v1138
        %v1315 = vsel %vm652, %v1311, %v1139
        %v1316 = vsel %vm622, %v1154, %v1172
        %v1317 = vsel %vm622, %v1155, %v1173
        %v1318 = vsel %vm622, %v1156, %v1174
        %v1319 = vsel %vm622, %v1157, %v1175
        %v1320 = vsel %vm627, %v1316, %v1190
        %v1321 = vsel %vm627, %v1317, %v1191
        %v1322 = vsel %vm627, %v1318, %v1192
        %v1323 = vsel %vm627, %v1319, %v1193
        %v1324 = vsel %vm632, %v1320, %v1208
        %v1325 = vsel %vm632, %v1321, %v1209
        %v1326 = vsel %vm632, %v1322, %v1210
        %v1327 = vsel %vm632, %v1323, %v1211
        %v1328 = vsel %vm637, %v1324, %v1226
        %v1329 = vsel %vm637, %v1325, %v1227
        %v1330 = vsel %vm637, %v1326, %v1228
        %v1331 = vsel %vm637, %v1327, %v1229
        %v1332 = vsel %vm642, %v1328, %v1244
        %v1333 = vsel %vm642, %v1329, %v1245
        %v1334 = vsel %vm642, %v1330, %v1246
        %v1335 = vsel %vm642, %v1331, %v1247
        %v1336 = vsel %vm647, %v1332, %v1262
        %v1337 = vsel %vm647, %v1333, %v1263
        %v1338 = vsel %vm647, %v1334, %v1264
        %v1339 = vsel %vm647, %v1335, %v1265
        %v1340 = vsel %vm652, %v1336, %v1280
        %v1341 = vsel %vm652, %v1337, %v1281
        %v1342 = vsel %vm652, %v1338, %v1282
        %v1343 = vsel %vm652, %v1339, %v1283
        %1352 = vrot.lane.b32.xlu0 %v1001, 109
        %v1353 = vpop.permute.xlu0 %1352
        %1354 = vrot.lane.b32.xlu0 %v1005, 109
        %v1355 = vpop.permute.xlu0 %1354
        %1356 = vrot.lane.b32.xlu0 %v1009, 109
        %v1357 = vpop.permute.xlu0 %1356
        %1358 = vrot.lane.b32.xlu0 %v1013, 109
        %v1359 = vpop.permute.xlu0 %1358
        %1360 = vrot.lane.b32.xlu0 %v1017, 109
        %v1361 = vpop.permute.xlu0 %1360
        %v1362 = vsel %vm703, %v1353, %v1355
        %v1363 = vsel %vm703, %v1355, %v1357
        %v1364 = vsel %vm703, %v1357, %v1359
        %v1365 = vsel %vm703, %v1359, %v1361
        %v1375 = vsel %vm622, %v1001, %v1028
        %v1376 = vsel %vm622, %v1005, %v1029
        %v1377 = vsel %vm622, %v1009, %v1030
        %v1378 = vsel %vm622, %v1013, %v1031
        %v1379 = vsel %vm622, %v1017, %v1027
        %v1380 = vsel %vm627, %v1375, %v1046
        %v1381 = vsel %vm627, %v1376, %v1047
        %v1382 = vsel %vm627, %v1377, %v1048
        %v1383 = vsel %vm627, %v1378, %v1049
        %v1384 = vsel %vm627, %v1379, %v1045
        %v1385 = vsel %vm632, %v1380, %v1064
        %v1386 = vsel %vm632, %v1381, %v1065
        %v1387 = vsel %vm632, %v1382, %v1066
        %v1388 = vsel %vm632, %v1383, %v1067
        %v1389 = vsel %vm632, %v1384, %v1063
        %v1390 = vsel %vm637, %v1385, %v1362
        %v1391 = vsel %vm637, %v1386, %v1363
        %v1392 = vsel %vm637, %v1387, %v1364
        %v1393 = vsel %vm637, %v1388, %v1365
        %v1394 = vsel %vm637, %v1389, %v1361
        %v1395 = vsel %vm642, %v1390, %v1100
        %v1396 = vsel %vm642, %v1391, %v1101
        %v1397 = vsel %vm642, %v1392, %v1102
        %v1398 = vsel %vm642, %v1393, %v1103
        %v1399 = vsel %vm642, %v1394, %v1099
        %v1400 = vsel %vm647, %v1395, %v1118
        %v1401 = vsel %vm647, %v1396, %v1119
        %v1402 = vsel %vm647, %v1397, %v1120
        %v1403 = vsel %vm647, %v1398, %v1121
        %v1404 = vsel %vm647, %v1399, %v1117
        %v1405 = vsel %vm652, %v1400, %v1136
        %v1406 = vsel %vm652, %v1401, %v1137
        %v1407 = vsel %vm652, %v1402, %v1138
        %v1408 = vsel %vm652, %v1403, %v1139
        %v1409 = vsel %vm652, %v1404, %v1135
        %v1410 = vsel %vm622, %v1154, 0.0
        %v1411 = vsel %vm622, %v1155, 0.0
        %v1412 = vsel %vm622, %v1156, 0.0
        %v1413 = vsel %vm622, %v1157, 0.0
        %v1414 = vsel %vm622, %v1153, 0.0
        %1425 = vrot.lane.b32.xlu0 %v1405, 67
        %v1426 = vpop.permute.xlu0 %1425
        %1427 = vrot.lane.b32.xlu0 %v1406, 67
        %v1428 = vpop.permute.xlu0 %1427
        %1429 = vrot.lane.b32.xlu0 %v1407, 67
        %v1430 = vpop.permute.xlu0 %1429
        %1431 = vrot.lane.b32.xlu0 %v1408, 67
        %v1432 = vpop.permute.xlu0 %1431
        %1433 = vrot.lane.b32.xlu0 %v1409, 67
        %v1434 = vpop.permute.xlu0 %1433
        %1435 = vrot.lane.b32.xlu0 %v1410, 67
        %v1436 = vpop.permute.xlu0 %1435
        %1437 = vrot.lane.b32.xlu0 %v1411, 67
        %v1438 = vpop.permute.xlu0 %1437
        %1439 = vrot.lane.b32.xlu0 %v1412, 67
        %v1440 = vpop.permute.xlu0 %1439
        %1441 = vrot.lane.b32.xlu0 %v1413, 67
        %v1442 = vpop.permute.xlu0 %1441
        %1443 = vrot.lane.b32.xlu0 %v1414, 67
        %v1444 = vpop.permute.xlu0 %1443
        %v1445 = vsel %vm787, %v1426, %v1428
        %v1446 = vsel %vm787, %v1428, %v1430
        %v1447 = vsel %vm787, %v1430, %v1432
        %v1448 = vsel %vm787, %v1432, %v1434
        %v1449 = vsel %vm787, %v1436, %v1438
        %v1450 = vsel %vm787, %v1438, %v1440
        %v1451 = vsel %vm787, %v1440, %v1442
        %v1452 = vsel %vm787, %v1442, %v1444
        %1461 = vmatprep.subr.mxu0 0.0
        %1462 = vmatpush1.msra.mxu0 0.0
        %1463 = vmatprep.subr.mxu0 0.0
        %1464 = vmatpush1.msra.mxu0 0.0
        %1465 = vmatprep.subr.mxu0 0.0
        %1466 = vmatpush1.msra.mxu0 0.0
        %1467 = vmatprep.subr.mxu0 0.0
        %1468 = vmatpush1.msra.mxu0 0.0
        %1469 = vmatprep.subr.mxu0 0.0
        %1470 = vmatpush1.msra.mxu0 0.0
        %1471 = vmatprep.subr.mxu0 0.0
        %1472 = vmatpush1.msra.mxu0 0.0
        %1473 = vmatprep.subr.mxu0 0.0
        %1474 = vmatpush1.msra.mxu0 0.0
        %1475 = vmatprep.subr.mxu0 0.0
        %1476 = vmatpush1.msra.mxu0 0.0
        %1477 = vmatprep.subr.mxu0 0.0
        %1478 = vmatpush1.msra.mxu0 0.0
        %1479 = vmatprep.subr.mxu0 0.0
        %1480 = vmatpush1.msra.mxu0 0.0
        %1481 = vmatprep.subr.mxu0 0.0
        %1482 = vmatpush1.msra.mxu0 0.0
        %1483 = vmatprep.subr.mxu0 0.0
        %1484 = vmatpush1.msra.mxu0 0.0
        %1485 = vmatprep.subr.mxu0 %v1450
        %1486 = vmatpush1.msra.mxu0 %v1449
        %1487 = vmatprep.subr.mxu0 %v1446
        %1488 = vmatpush1.msra.mxu0 %v1445
        %1489 = vmatprep.subr.mxu0 %v1341
        %1490 = vmatpush1.msra.mxu0 %v1340
        %1491 = vmatprep.subr.mxu0 %v1313
        %1492 = vmatpush1.msra.mxu0 %v1312
        %1493 = vmatprep.subr.mxu0 0.0
        %1494 = vmatpush2.msra.mxu0 0.0
        %1495 = vmatprep.subr.mxu0 0.0
        %1496 = vmatpush2.msra.mxu0 0.0
        %1497 = vmatprep.subr.mxu0 0.0
        %1498 = vmatpush2.msra.mxu0 0.0
        %1499 = vmatprep.subr.mxu0 0.0
        %1500 = vmatpush2.msra.mxu0 0.0
        %1501 = vmatprep.subr.mxu0 0.0
        %1502 = vmatpush2.msra.mxu0 0.0
        %1503 = vmatprep.subr.mxu0 0.0
        %1504 = vmatpush2.msra.mxu0 0.0
        %1505 = vmatprep.subr.mxu0 0.0
        %1506 = vmatpush2.msra.mxu0 0.0
        %1507 = vmatprep.subr.mxu0 0.0
        %1508 = vmatpush2.msra.mxu0 0.0
        %1509 = vmatprep.subr.mxu0 0.0
        %1510 = vmatpush2.msra.mxu0 0.0
        %1511 = vmatprep.subr.mxu0 0.0
        %1512 = vmatpush2.msra.mxu0 0.0
        %1513 = vmatprep.subr.mxu0 0.0
        %1514 = vmatpush2.msra.mxu0 0.0
        %1515 = vmatprep.subr.mxu0 0.0
        %1516 = vmatpush2.msra.mxu0 0.0
        %1517 = vmatprep.subr.mxu0 0.0
        %1518 = vmatpush2.msra.mxu0 0.0
        %1519 = vmatprep.subr.mxu0 0.0
        %1520 = vmatpush2.msra.mxu0 0.0
        %1521 = vmatprep.subr.mxu0 0.0
        %1522 = vmatpush2.msra.mxu0 0.0
        %1523 = vmatprep.subr.mxu0 0.0
        %1524 = vmatpush2.msra.mxu0 0.0
        %1525 = vmatprep.mubr.f32.mxu0 0.0
        %1526 = vmatmul.mubr.f32.gmra.mxu0 %v806
        %v1527 = vpop.f32.mrf.mxu0
        %v1528 = vadd.f32 0.0, %v1527
        %v1529 = vpop.f32.mrf.mxu0
        %v1530 = vadd.f32 0.0, %v1529
        %1531 = vmatprep.mubr.f32.mxu0 0.0
        %1532 = vmatmul.mubr.f32.gmra.mxu0 %v809
        %v1533 = vpop.f32.mrf.mxu0
        %v1534 = vadd.f32 0.0, %v1533
        %v1535 = vpop.f32.mrf.mxu0
        %v1536 = vadd.f32 0.0, %v1535
        %1537 = vdwg.mxu0
        %1538 = vmatprep.subr.mxu0 0.0
        %1539 = vmatpush1.msra.mxu0 0.0
        %1540 = vmatprep.subr.mxu0 0.0
        %1541 = vmatpush1.msra.mxu0 0.0
        %1542 = vmatprep.subr.mxu0 0.0
        %1543 = vmatpush1.msra.mxu0 0.0
        %1544 = vmatprep.subr.mxu0 0.0
        %1545 = vmatpush1.msra.mxu0 0.0
        %1546 = vmatprep.subr.mxu0 0.0
        %1547 = vmatpush1.msra.mxu0 0.0
        %1548 = vmatprep.subr.mxu0 0.0
        %1549 = vmatpush1.msra.mxu0 0.0
        %1550 = vmatprep.subr.mxu0 0.0
        %1551 = vmatpush1.msra.mxu0 0.0
        %1552 = vmatprep.subr.mxu0 0.0
        %1553 = vmatpush1.msra.mxu0 0.0
        %1554 = vmatprep.subr.mxu0 0.0
        %1555 = vmatpush1.msra.mxu0 0.0
        %1556 = vmatprep.subr.mxu0 0.0
        %1557 = vmatpush1.msra.mxu0 0.0
        %1558 = vmatprep.subr.mxu0 0.0
        %1559 = vmatpush1.msra.mxu0 0.0
        %1560 = vmatprep.subr.mxu0 0.0
        %1561 = vmatpush1.msra.mxu0 0.0
        %1562 = vmatprep.subr.mxu0 %v1452
        %1563 = vmatpush1.msra.mxu0 %v1451
        %1564 = vmatprep.subr.mxu0 %v1448
        %1565 = vmatpush1.msra.mxu0 %v1447
        %1566 = vmatprep.subr.mxu0 %v1343
        %1567 = vmatpush1.msra.mxu0 %v1342
        %1568 = vmatprep.subr.mxu0 %v1315
        %1569 = vmatpush1.msra.mxu0 %v1314
        %1570 = vmatprep.subr.mxu0 0.0
        %1571 = vmatpush2.msra.mxu0 0.0
        %1572 = vmatprep.subr.mxu0 0.0
        %1573 = vmatpush2.msra.mxu0 0.0
        %1574 = vmatprep.subr.mxu0 0.0
        %1575 = vmatpush2.msra.mxu0 0.0
        %1576 = vmatprep.subr.mxu0 0.0
        %1577 = vmatpush2.msra.mxu0 0.0
        %1578 = vmatprep.subr.mxu0 0.0
        %1579 = vmatpush2.msra.mxu0 0.0
        %1580 = vmatprep.subr.mxu0 0.0
        %1581 = vmatpush2.msra.mxu0 0.0
        %1582 = vmatprep.subr.mxu0 0.0
        %1583 = vmatpush2.msra.mxu0 0.0
        %1584 = vmatprep.subr.mxu0 0.0
        %1585 = vmatpush2.msra.mxu0 0.0
        %1586 = vmatprep.subr.mxu0 0.0
        %1587 = vmatpush2.msra.mxu0 0.0
        %1588 = vmatprep.subr.mxu0 0.0
        %1589 = vmatpush2.msra.mxu0 0.0
        %1590 = vmatprep.subr.mxu0 0.0
        %1591 = vmatpush2.msra.mxu0 0.0
        %1592 = vmatprep.subr.mxu0 0.0
        %1593 = vmatpush2.msra.mxu0 0.0
        %1594 = vmatprep.subr.mxu0 0.0
        %1595 = vmatpush2.msra.mxu0 0.0
        %1596 = vmatprep.subr.mxu0 0.0
        %1597 = vmatpush2.msra.mxu0 0.0
        %1598 = vmatprep.subr.mxu0 0.0
        %1599 = vmatpush2.msra.mxu0 0.0
        %1600 = vmatprep.subr.mxu0 0.0
        %1601 = vmatpush2.msra.mxu0 0.0
        %1602 = vmatprep.mubr.f32.mxu0 0.0
        %1603 = vmatmul.mubr.f32.gmra.mxu0 %v806
        %v1604 = vpop.f32.mrf.mxu0
        %v1605 = vadd.f32 0.0, %v1604
        %v1606 = vpop.f32.mrf.mxu0
        %v1607 = vadd.f32 0.0, %v1606
        %1608 = vmatprep.mubr.f32.mxu0 0.0
        %1609 = vmatmul.mubr.f32.gmra.mxu0 %v809
        %v1610 = vpop.f32.mrf.mxu0
        %v1611 = vadd.f32 0.0, %v1610
        %v1612 = vpop.f32.mrf.mxu0
        %v1613 = vadd.f32 0.0, %v1612
        %1614 = vdwg.mxu0
        %v1615 = vmul.f32 %v1528, %v1534
        %v1616 = vmul.f32 %v1530, %v1536
        %v1617 = vmul.f32 %v1605, %v1611
        %v1618 = vmul.f32 %v1607, %v1613
        %v1619 = vadd.f32 %v969, %v1615
        %v1620 = vadd.f32 %v970, %v1616
        %v1621 = vadd.f32 %v971, %v1617
        %v1622 = vadd.f32 %v972, %v1618
        %s1623 = scalar_lea.vmem [#allocation2], 2
        %v1624 = vld [vmem:[%s1623] ss:$4 sm:$0xf]
        %v1625 = vld [vmem:[%s1623] ss:$4 sm:$0x1f]
        %v1627 = vlaneseq
        %v1628 = vshrl.u32 %v1627, 7
        %v1629 = vsub.s32 0, %v1628
        %v1630 = vrot.slane %v1624, %v1629
        %v1631 = vlaneseq
        %v1632 = vshrl.u32 %v1631, 7
        %v1633 = vsub.s32 1, %v1632
        %v1634 = vrot.slane %v1624, %v1633
        %v1635 = vlaneseq
        %v1636 = vshrl.u32 %v1635, 7
        %v1637 = vsub.s32 2, %v1636
        %v1638 = vrot.slane %v1624, %v1637
        %v1639 = vlaneseq
        %v1640 = vshrl.u32 %v1639, 7
        %v1641 = vsub.s32 3, %v1640
        %v1642 = vrot.slane %v1624, %v1641
        %v1648 = vlaneseq
        %v1649 = vshrl.u32 %v1648, 7
        %v1650 = vsub.s32 0, %v1649
        %v1651 = vrot.slane %v1625, %v1650
        %v1652 = vlaneseq
        %v1653 = vshrl.u32 %v1652, 7
        %v1654 = vsub.s32 1, %v1653
        %v1655 = vrot.slane %v1625, %v1654
        %v1656 = vlaneseq
        %v1657 = vshrl.u32 %v1656, 7
        %v1658 = vsub.s32 2, %v1657
        %v1659 = vrot.slane %v1625, %v1658
        %v1660 = vlaneseq
        %v1661 = vshrl.u32 %v1660, 7
        %v1662 = vsub.s32 3, %v1661
        %v1663 = vrot.slane %v1625, %v1662
        %v1664 = vlaneseq
        %v1665 = vshrl.u32 %v1664, 7
        %v1666 = vsub.s32 4, %v1665
        %v1667 = vrot.slane %v1625, %v1666
        %1668 = vrot.lane.b32.xlu0 %v1651, 127
        %v1669 = vpop.permute.xlu0 %1668
        %1670 = vrot.lane.b32.xlu0 %v1655, 127
        %v1671 = vpop.permute.xlu0 %1670
        %1672 = vrot.lane.b32.xlu0 %v1659, 127
        %v1673 = vpop.permute.xlu0 %1672
        %1674 = vrot.lane.b32.xlu0 %v1663, 127
        %v1675 = vpop.permute.xlu0 %1674
        %1676 = vrot.lane.b32.xlu0 %v1667, 127
        %v1677 = vpop.permute.xlu0 %1676
        %v1678 = vsel %vm347, %v1669, %v1671
        %v1679 = vsel %vm347, %v1671, %v1673
        %v1680 = vsel %vm347, %v1673, %v1675
        %v1681 = vsel %vm347, %v1675, %v1677
        %1686 = vrot.lane.b32.xlu0 %v1651, 126
        %v1687 = vpop.permute.xlu0 %1686
        %1688 = vrot.lane.b32.xlu0 %v1655, 126
        %v1689 = vpop.permute.xlu0 %1688
        %1690 = vrot.lane.b32.xlu0 %v1659, 126
        %v1691 = vpop.permute.xlu0 %1690
        %1692 = vrot.lane.b32.xlu0 %v1663, 126
        %v1693 = vpop.permute.xlu0 %1692
        %1694 = vrot.lane.b32.xlu0 %v1667, 126
        %v1695 = vpop.permute.xlu0 %1694
        %v1696 = vsel %vm366, %v1687, %v1689
        %v1697 = vsel %vm366, %v1689, %v1691
        %v1698 = vsel %vm366, %v1691, %v1693
        %v1699 = vsel %vm366, %v1693, %v1695
        %1704 = vrot.lane.b32.xlu0 %v1651, 125
        %v1705 = vpop.permute.xlu0 %1704
        %1706 = vrot.lane.b32.xlu0 %v1655, 125
        %v1707 = vpop.permute.xlu0 %1706
        %1708 = vrot.lane.b32.xlu0 %v1659, 125
        %v1709 = vpop.permute.xlu0 %1708
        %1710 = vrot.lane.b32.xlu0 %v1663, 125
        %v1711 = vpop.permute.xlu0 %1710
        %1712 = vrot.lane.b32.xlu0 %v1667, 125
        %v1713 = vpop.permute.xlu0 %1712
        %v1714 = vsel %vm385, %v1705, %v1707
        %v1715 = vsel %vm385, %v1707, %v1709
        %v1716 = vsel %vm385, %v1709, %v1711
        %v1717 = vsel %vm385, %v1711, %v1713
        %1722 = vrot.lane.b32.xlu0 %v1651, 124
        %v1723 = vpop.permute.xlu0 %1722
        %1724 = vrot.lane.b32.xlu0 %v1655, 124
        %v1725 = vpop.permute.xlu0 %1724
        %1726 = vrot.lane.b32.xlu0 %v1659, 124
        %v1727 = vpop.permute.xlu0 %1726
        %1728 = vrot.lane.b32.xlu0 %v1663, 124
        %v1729 = vpop.permute.xlu0 %1728
        %1730 = vrot.lane.b32.xlu0 %v1667, 124
        %v1731 = vpop.permute.xlu0 %1730
        %v1732 = vsel %vm404, %v1723, %v1725
        %v1733 = vsel %vm404, %v1725, %v1727
        %v1734 = vsel %vm404, %v1727, %v1729
        %v1735 = vsel %vm404, %v1729, %v1731
        %1740 = vrot.lane.b32.xlu0 %v1651, 108
        %v1741 = vpop.permute.xlu0 %1740
        %1742 = vrot.lane.b32.xlu0 %v1655, 108
        %v1743 = vpop.permute.xlu0 %1742
        %1744 = vrot.lane.b32.xlu0 %v1659, 108
        %v1745 = vpop.permute.xlu0 %1744
        %1746 = vrot.lane.b32.xlu0 %v1663, 108
        %v1747 = vpop.permute.xlu0 %1746
        %1748 = vrot.lane.b32.xlu0 %v1667, 108
        %v1749 = vpop.permute.xlu0 %1748
        %v1750 = vsel %vm423, %v1741, %v1743
        %v1751 = vsel %vm423, %v1743, %v1745
        %v1752 = vsel %vm423, %v1745, %v1747
        %v1753 = vsel %vm423, %v1747, %v1749
        %1758 = vrot.lane.b32.xlu0 %v1651, 107
        %v1759 = vpop.permute.xlu0 %1758
        %1760 = vrot.lane.b32.xlu0 %v1655, 107
        %v1761 = vpop.permute.xlu0 %1760
        %1762 = vrot.lane.b32.xlu0 %v1659, 107
        %v1763 = vpop.permute.xlu0 %1762
        %1764 = vrot.lane.b32.xlu0 %v1663, 107
        %v1765 = vpop.permute.xlu0 %1764
        %1766 = vrot.lane.b32.xlu0 %v1667, 107
        %v1767 = vpop.permute.xlu0 %1766
        %v1768 = vsel %vm442, %v1759, %v1761
        %v1769 = vsel %vm442, %v1761, %v1763
        %v1770 = vsel %vm442, %v1763, %v1765
        %v1771 = vsel %vm442, %v1765, %v1767
        %1776 = vrot.lane.b32.xlu0 %v1651, 106
        %v1777 = vpop.permute.xlu0 %1776
        %1778 = vrot.lane.b32.xlu0 %v1655, 106
        %v1779 = vpop.permute.xlu0 %1778
        %1780 = vrot.lane.b32.xlu0 %v1659, 106
        %v1781 = vpop.permute.xlu0 %1780
        %1782 = vrot.lane.b32.xlu0 %v1663, 106
        %v1783 = vpop.permute.xlu0 %1782
        %1784 = vrot.lane.b32.xlu0 %v1667, 106
        %v1785 = vpop.permute.xlu0 %1784
        %v1786 = vsel %vm461, %v1777, %v1779
        %v1787 = vsel %vm461, %v1779, %v1781
        %v1788 = vsel %vm461, %v1781, %v1783
        %v1789 = vsel %vm461, %v1783, %v1785
        %1794 = vrot.lane.b32.xlu0 %v1651, 105
        %v1795 = vpop.permute.xlu0 %1794
        %1796 = vrot.lane.b32.xlu0 %v1655, 105
        %v1797 = vpop.permute.xlu0 %1796
        %1798 = vrot.lane.b32.xlu0 %v1659, 105
        %v1799 = vpop.permute.xlu0 %1798
        %1800 = vrot.lane.b32.xlu0 %v1663, 105
        %v1801 = vpop.permute.xlu0 %1800
        %1802 = vrot.lane.b32.xlu0 %v1667, 105
        %v1803 = vpop.permute.xlu0 %1802
        %v1804 = vsel %vm480, %v1795, %v1797
        %v1805 = vsel %vm480, %v1797, %v1799
        %v1806 = vsel %vm480, %v1799, %v1801
        %v1807 = vsel %vm480, %v1801, %v1803
        %1812 = vrot.lane.b32.xlu0 %v1651, 104
        %v1813 = vpop.permute.xlu0 %1812
        %1814 = vrot.lane.b32.xlu0 %v1655, 104
        %v1815 = vpop.permute.xlu0 %1814
        %1816 = vrot.lane.b32.xlu0 %v1659, 104
        %v1817 = vpop.permute.xlu0 %1816
        %1818 = vrot.lane.b32.xlu0 %v1663, 104
        %v1819 = vpop.permute.xlu0 %1818
        %1820 = vrot.lane.b32.xlu0 %v1667, 104
        %v1821 = vpop.permute.xlu0 %1820
        %v1822 = vsel %vm499, %v1813, %v1815
        %v1823 = vsel %vm499, %v1815, %v1817
        %v1824 = vsel %vm499, %v1817, %v1819
        %v1825 = vsel %vm499, %v1819, %v1821
        %1830 = vrot.lane.b32.xlu0 %v1651, 88
        %v1831 = vpop.permute.xlu0 %1830
        %1832 = vrot.lane.b32.xlu0 %v1655, 88
        %v1833 = vpop.permute.xlu0 %1832
        %1834 = vrot.lane.b32.xlu0 %v1659, 88
        %v1835 = vpop.permute.xlu0 %1834
        %1836 = vrot.lane.b32.xlu0 %v1663, 88
        %v1837 = vpop.permute.xlu0 %1836
        %1838 = vrot.lane.b32.xlu0 %v1667, 88
        %v1839 = vpop.permute.xlu0 %1838
        %v1840 = vsel %vm518, %v1831, %v1833
        %v1841 = vsel %vm518, %v1833, %v1835
        %v1842 = vsel %vm518, %v1835, %v1837
        %v1843 = vsel %vm518, %v1837, %v1839
        %1848 = vrot.lane.b32.xlu0 %v1651, 87
        %v1849 = vpop.permute.xlu0 %1848
        %1850 = vrot.lane.b32.xlu0 %v1655, 87
        %v1851 = vpop.permute.xlu0 %1850
        %1852 = vrot.lane.b32.xlu0 %v1659, 87
        %v1853 = vpop.permute.xlu0 %1852
        %1854 = vrot.lane.b32.xlu0 %v1663, 87
        %v1855 = vpop.permute.xlu0 %1854
        %1856 = vrot.lane.b32.xlu0 %v1667, 87
        %v1857 = vpop.permute.xlu0 %1856
        %v1858 = vsel %vm537, %v1849, %v1851
        %v1859 = vsel %vm537, %v1851, %v1853
        %v1860 = vsel %vm537, %v1853, %v1855
        %v1861 = vsel %vm537, %v1855, %v1857
        %1866 = vrot.lane.b32.xlu0 %v1651, 86
        %v1867 = vpop.permute.xlu0 %1866
        %1868 = vrot.lane.b32.xlu0 %v1655, 86
        %v1869 = vpop.permute.xlu0 %1868
        %1870 = vrot.lane.b32.xlu0 %v1659, 86
        %v1871 = vpop.permute.xlu0 %1870
        %1872 = vrot.lane.b32.xlu0 %v1663, 86
        %v1873 = vpop.permute.xlu0 %1872
        %1874 = vrot.lane.b32.xlu0 %v1667, 86
        %v1875 = vpop.permute.xlu0 %1874
        %v1876 = vsel %vm556, %v1867, %v1869
        %v1877 = vsel %vm556, %v1869, %v1871
        %v1878 = vsel %vm556, %v1871, %v1873
        %v1879 = vsel %vm556, %v1873, %v1875
        %1884 = vrot.lane.b32.xlu0 %v1651, 85
        %v1885 = vpop.permute.xlu0 %1884
        %1886 = vrot.lane.b32.xlu0 %v1655, 85
        %v1887 = vpop.permute.xlu0 %1886
        %1888 = vrot.lane.b32.xlu0 %v1659, 85
        %v1889 = vpop.permute.xlu0 %1888
        %1890 = vrot.lane.b32.xlu0 %v1663, 85
        %v1891 = vpop.permute.xlu0 %1890
        %1892 = vrot.lane.b32.xlu0 %v1667, 85
        %v1893 = vpop.permute.xlu0 %1892
        %v1894 = vsel %vm575, %v1885, %v1887
        %v1895 = vsel %vm575, %v1887, %v1889
        %v1896 = vsel %vm575, %v1889, %v1891
        %v1897 = vsel %vm575, %v1891, %v1893
        %1902 = vrot.lane.b32.xlu0 %v1651, 84
        %v1903 = vpop.permute.xlu0 %1902
        %1904 = vrot.lane.b32.xlu0 %v1655, 84
        %v1905 = vpop.permute.xlu0 %1904
        %1906 = vrot.lane.b32.xlu0 %v1659, 84
        %v1907 = vpop.permute.xlu0 %1906
        %1908 = vrot.lane.b32.xlu0 %v1663, 84
        %v1909 = vpop.permute.xlu0 %1908
        %1910 = vrot.lane.b32.xlu0 %v1667, 84
        %v1911 = vpop.permute.xlu0 %1910
        %v1912 = vsel %vm594, %v1903, %v1905
        %v1913 = vsel %vm594, %v1905, %v1907
        %v1914 = vsel %vm594, %v1907, %v1909
        %v1915 = vsel %vm594, %v1909, %v1911
        %1920 = vrot.lane.b32.xlu0 %v1651, 68
        %v1921 = vpop.permute.xlu0 %1920
        %1922 = vrot.lane.b32.xlu0 %v1655, 68
        %v1923 = vpop.permute.xlu0 %1922
        %1924 = vrot.lane.b32.xlu0 %v1659, 68
        %v1925 = vpop.permute.xlu0 %1924
        %1926 = vrot.lane.b32.xlu0 %v1663, 68
        %v1927 = vpop.permute.xlu0 %1926
        %1928 = vrot.lane.b32.xlu0 %v1667, 68
        %v1929 = vpop.permute.xlu0 %1928
        %v1930 = vsel %vm613, %v1921, %v1923
        %v1931 = vsel %vm613, %v1923, %v1925
        %v1932 = vsel %vm613, %v1925, %v1927
        %v1933 = vsel %vm613, %v1927, %v1929
        %v1938 = vsel %vm622, %v1630, %v1678
        %v1939 = vsel %vm622, %v1634, %v1679
        %v1940 = vsel %vm622, %v1638, %v1680
        %v1941 = vsel %vm622, %v1642, %v1681
        %v1942 = vsel %vm627, %v1938, %v1696
        %v1943 = vsel %vm627, %v1939, %v1697
        %v1944 = vsel %vm627, %v1940, %v1698
        %v1945 = vsel %vm627, %v1941, %v1699
        %v1946 = vsel %vm632, %v1942, %v1714
        %v1947 = vsel %vm632, %v1943, %v1715
        %v1948 = vsel %vm632, %v1944, %v1716
        %v1949 = vsel %vm632, %v1945, %v1717
        %v1950 = vsel %vm637, %v1946, %v1732
        %v1951 = vsel %vm637, %v1947, %v1733
        %v1952 = vsel %vm637, %v1948, %v1734
        %v1953 = vsel %vm637, %v1949, %v1735
        %v1954 = vsel %vm642, %v1950, %v1750
        %v1955 = vsel %vm642, %v1951, %v1751
        %v1956 = vsel %vm642, %v1952, %v1752
        %v1957 = vsel %vm642, %v1953, %v1753
        %v1958 = vsel %vm647, %v1954, %v1768
        %v1959 = vsel %vm647, %v1955, %v1769
        %v1960 = vsel %vm647, %v1956, %v1770
        %v1961 = vsel %vm647, %v1957, %v1771
        %v1962 = vsel %vm652, %v1958, %v1786
        %v1963 = vsel %vm652, %v1959, %v1787
        %v1964 = vsel %vm652, %v1960, %v1788
        %v1965 = vsel %vm652, %v1961, %v1789
        %v1966 = vsel %vm622, %v1804, %v1822
        %v1967 = vsel %vm622, %v1805, %v1823
        %v1968 = vsel %vm622, %v1806, %v1824
        %v1969 = vsel %vm622, %v1807, %v1825
        %v1970 = vsel %vm627, %v1966, %v1840
        %v1971 = vsel %vm627, %v1967, %v1841
        %v1972 = vsel %vm627, %v1968, %v1842
        %v1973 = vsel %vm627, %v1969, %v1843
        %v1974 = vsel %vm632, %v1970, %v1858
        %v1975 = vsel %vm632, %v1971, %v1859
        %v1976 = vsel %vm632, %v1972, %v1860
        %v1977 = vsel %vm632, %v1973, %v1861
        %v1978 = vsel %vm637, %v1974, %v1876
        %v1979 = vsel %vm637, %v1975, %v1877
        %v1980 = vsel %vm637, %v1976, %v1878
        %v1981 = vsel %vm637, %v1977, %v1879
        %v1982 = vsel %vm642, %v1978, %v1894
        %v1983 = vsel %vm642, %v1979, %v1895
        %v1984 = vsel %vm642, %v1980, %v1896
        %v1985 = vsel %vm642, %v1981, %v1897
        %v1986 = vsel %vm647, %v1982, %v1912
        %v1987 = vsel %vm647, %v1983, %v1913
        %v1988 = vsel %vm647, %v1984, %v1914
        %v1989 = vsel %vm647, %v1985, %v1915
        %v1990 = vsel %vm652, %v1986, %v1930
        %v1991 = vsel %vm652, %v1987, %v1931
        %v1992 = vsel %vm652, %v1988, %v1932
        %v1993 = vsel %vm652, %v1989, %v1933
        %2002 = vrot.lane.b32.xlu0 %v1651, 109
        %v2003 = vpop.permute.xlu0 %2002
        %2004 = vrot.lane.b32.xlu0 %v1655, 109
        %v2005 = vpop.permute.xlu0 %2004
        %2006 = vrot.lane.b32.xlu0 %v1659, 109
        %v2007 = vpop.permute.xlu0 %2006
        %2008 = vrot.lane.b32.xlu0 %v1663, 109
        %v2009 = vpop.permute.xlu0 %2008
        %2010 = vrot.lane.b32.xlu0 %v1667, 109
        %v2011 = vpop.permute.xlu0 %2010
        %v2012 = vsel %vm703, %v2003, %v2005
        %v2013 = vsel %vm703, %v2005, %v2007
        %v2014 = vsel %vm703, %v2007, %v2009
        %v2015 = vsel %vm703, %v2009, %v2011
        %v2025 = vsel %vm622, %v1651, %v1678
        %v2026 = vsel %vm622, %v1655, %v1679
        %v2027 = vsel %vm622, %v1659, %v1680
        %v2028 = vsel %vm622, %v1663, %v1681
        %v2029 = vsel %vm622, %v1667, %v1677
        %v2030 = vsel %vm627, %v2025, %v1696
        %v2031 = vsel %vm627, %v2026, %v1697
        %v2032 = vsel %vm627, %v2027, %v1698
        %v2033 = vsel %vm627, %v2028, %v1699
        %v2034 = vsel %vm627, %v2029, %v1695
        %v2035 = vsel %vm632, %v2030, %v1714
        %v2036 = vsel %vm632, %v2031, %v1715
        %v2037 = vsel %vm632, %v2032, %v1716
        %v2038 = vsel %vm632, %v2033, %v1717
        %v2039 = vsel %vm632, %v2034, %v1713
        %v2040 = vsel %vm637, %v2035, %v2012
        %v2041 = vsel %vm637, %v2036, %v2013
        %v2042 = vsel %vm637, %v2037, %v2014
        %v2043 = vsel %vm637, %v2038, %v2015
        %v2044 = vsel %vm637, %v2039, %v2011
        %v2045 = vsel %vm642, %v2040, %v1750
        %v2046 = vsel %vm642, %v2041, %v1751
        %v2047 = vsel %vm642, %v2042, %v1752
        %v2048 = vsel %vm642, %v2043, %v1753
        %v2049 = vsel %vm642, %v2044, %v1749
        %v2050 = vsel %vm647, %v2045, %v1768
        %v2051 = vsel %vm647, %v2046, %v1769
        %v2052 = vsel %vm647, %v2047, %v1770
        %v2053 = vsel %vm647, %v2048, %v1771
        %v2054 = vsel %vm647, %v2049, %v1767
        %v2055 = vsel %vm652, %v2050, %v1786
        %v2056 = vsel %vm652, %v2051, %v1787
        %v2057 = vsel %vm652, %v2052, %v1788
        %v2058 = vsel %vm652, %v2053, %v1789
        %v2059 = vsel %vm652, %v2054, %v1785
        %v2060 = vsel %vm622, %v1804, 0.0
        %v2061 = vsel %vm622, %v1805, 0.0
        %v2062 = vsel %vm622, %v1806, 0.0
        %v2063 = vsel %vm622, %v1807, 0.0
        %v2064 = vsel %vm622, %v1803, 0.0
        %2075 = vrot.lane.b32.xlu0 %v2055, 67
        %v2076 = vpop.permute.xlu0 %2075
        %2077 = vrot.lane.b32.xlu0 %v2056, 67
        %v2078 = vpop.permute.xlu0 %2077
        %2079 = vrot.lane.b32.xlu0 %v2057, 67
        %v2080 = vpop.permute.xlu0 %2079
        %2081 = vrot.lane.b32.xlu0 %v2058, 67
        %v2082 = vpop.permute.xlu0 %2081
        %2083 = vrot.lane.b32.xlu0 %v2059, 67
        %v2084 = vpop.permute.xlu0 %2083
        %2085 = vrot.lane.b32.xlu0 %v2060, 67
        %v2086 = vpop.permute.xlu0 %2085
        %2087 = vrot.lane.b32.xlu0 %v2061, 67
        %v2088 = vpop.permute.xlu0 %2087
        %2089 = vrot.lane.b32.xlu0 %v2062, 67
        %v2090 = vpop.permute.xlu0 %2089
        %2091 = vrot.lane.b32.xlu0 %v2063, 67
        %v2092 = vpop.permute.xlu0 %2091
        %2093 = vrot.lane.b32.xlu0 %v2064, 67
        %v2094 = vpop.permute.xlu0 %2093
        %v2095 = vsel %vm787, %v2076, %v2078
        %v2096 = vsel %vm787, %v2078, %v2080
        %v2097 = vsel %vm787, %v2080, %v2082
        %v2098 = vsel %vm787, %v2082, %v2084
        %v2099 = vsel %vm787, %v2086, %v2088
        %v2100 = vsel %vm787, %v2088, %v2090
        %v2101 = vsel %vm787, %v2090, %v2092
        %v2102 = vsel %vm787, %v2092, %v2094
        %2111 = vmatprep.subr.mxu0 0.0
        %2112 = vmatpush1.msra.mxu0 0.0
        %2113 = vmatprep.subr.mxu0 0.0
        %2114 = vmatpush1.msra.mxu0 0.0
        %2115 = vmatprep.subr.mxu0 0.0
        %2116 = vmatpush1.msra.mxu0 0.0
        %2117 = vmatprep.subr.mxu0 0.0
        %2118 = vmatpush1.msra.mxu0 0.0
        %2119 = vmatprep.subr.mxu0 0.0
        %2120 = vmatpush1.msra.mxu0 0.0
        %2121 = vmatprep.subr.mxu0 0.0
        %2122 = vmatpush1.msra.mxu0 0.0
        %2123 = vmatprep.subr.mxu0 0.0
        %2124 = vmatpush1.msra.mxu0 0.0
        %2125 = vmatprep.subr.mxu0 0.0
        %2126 = vmatpush1.msra.mxu0 0.0
        %2127 = vmatprep.subr.mxu0 0.0
        %2128 = vmatpush1.msra.mxu0 0.0
        %2129 = vmatprep.subr.mxu0 0.0
        %2130 = vmatpush1.msra.mxu0 0.0
        %2131 = vmatprep.subr.mxu0 0.0
        %2132 = vmatpush1.msra.mxu0 0.0
        %2133 = vmatprep.subr.mxu0 0.0
        %2134 = vmatpush1.msra.mxu0 0.0
        %2135 = vmatprep.subr.mxu0 %v2100
        %2136 = vmatpush1.msra.mxu0 %v2099
        %2137 = vmatprep.subr.mxu0 %v2096
        %2138 = vmatpush1.msra.mxu0 %v2095
        %2139 = vmatprep.subr.mxu0 %v1991
        %2140 = vmatpush1.msra.mxu0 %v1990
        %2141 = vmatprep.subr.mxu0 %v1963
        %2142 = vmatpush1.msra.mxu0 %v1962
        %2143 = vmatprep.subr.mxu0 0.0
        %2144 = vmatpush2.msra.mxu0 0.0
        %2145 = vmatprep.subr.mxu0 0.0
        %2146 = vmatpush2.msra.mxu0 0.0
        %2147 = vmatprep.subr.mxu0 0.0
        %2148 = vmatpush2.msra.mxu0 0.0
        %2149 = vmatprep.subr.mxu0 0.0
        %2150 = vmatpush2.msra.mxu0 0.0
        %2151 = vmatprep.subr.mxu0 0.0
        %2152 = vmatpush2.msra.mxu0 0.0
        %2153 = vmatprep.subr.mxu0 0.0
        %2154 = vmatpush2.msra.mxu0 0.0
        %2155 = vmatprep.subr.mxu0 0.0
        %2156 = vmatpush2.msra.mxu0 0.0
        %2157 = vmatprep.subr.mxu0 0.0
        %2158 = vmatpush2.msra.mxu0 0.0
        %2159 = vmatprep.subr.mxu0 0.0
        %2160 = vmatpush2.msra.mxu0 0.0
        %2161 = vmatprep.subr.mxu0 0.0
        %2162 = vmatpush2.msra.mxu0 0.0
        %2163 = vmatprep.subr.mxu0 0.0
        %2164 = vmatpush2.msra.mxu0 0.0
        %2165 = vmatprep.subr.mxu0 0.0
        %2166 = vmatpush2.msra.mxu0 0.0
        %2167 = vmatprep.subr.mxu0 0.0
        %2168 = vmatpush2.msra.mxu0 0.0
        %2169 = vmatprep.subr.mxu0 0.0
        %2170 = vmatpush2.msra.mxu0 0.0
        %2171 = vmatprep.subr.mxu0 0.0
        %2172 = vmatpush2.msra.mxu0 0.0
        %2173 = vmatprep.subr.mxu0 0.0
        %2174 = vmatpush2.msra.mxu0 0.0
        %2175 = vmatprep.mubr.f32.mxu0 0.0
        %2176 = vmatmul.mubr.f32.gmra.mxu0 %v806
        %v2177 = vpop.f32.mrf.mxu0
        %v2178 = vadd.f32 0.0, %v2177
        %v2179 = vpop.f32.mrf.mxu0
        %v2180 = vadd.f32 0.0, %v2179
        %2181 = vmatprep.mubr.f32.mxu0 0.0
        %2182 = vmatmul.mubr.f32.gmra.mxu0 %v809
        %v2183 = vpop.f32.mrf.mxu0
        %v2184 = vadd.f32 0.0, %v2183
        %v2185 = vpop.f32.mrf.mxu0
        %v2186 = vadd.f32 0.0, %v2185
        %2187 = vdwg.mxu0
        %2188 = vmatprep.subr.mxu0 0.0
        %2189 = vmatpush1.msra.mxu0 0.0
        %2190 = vmatprep.subr.mxu0 0.0
        %2191 = vmatpush1.msra.mxu0 0.0
        %2192 = vmatprep.subr.mxu0 0.0
        %2193 = vmatpush1.msra.mxu0 0.0
        %2194 = vmatprep.subr.mxu0 0.0
        %2195 = vmatpush1.msra.mxu0 0.0
        %2196 = vmatprep.subr.mxu0 0.0
        %2197 = vmatpush1.msra.mxu0 0.0
        %2198 = vmatprep.subr.mxu0 0.0
        %2199 = vmatpush1.msra.mxu0 0.0
        %2200 = vmatprep.subr.mxu0 0.0
        %2201 = vmatpush1.msra.mxu0 0.0
        %2202 = vmatprep.subr.mxu0 0.0
        %2203 = vmatpush1.msra.mxu0 0.0
        %2204 = vmatprep.subr.mxu0 0.0
        %2205 = vmatpush1.msra.mxu0 0.0
        %2206 = vmatprep.subr.mxu0 0.0
        %2207 = vmatpush1.msra.mxu0 0.0
        %2208 = vmatprep.subr.mxu0 0.0
        %2209 = vmatpush1.msra.mxu0 0.0
        %2210 = vmatprep.subr.mxu0 0.0
        %2211 = vmatpush1.msra.mxu0 0.0
        %2212 = vmatprep.subr.mxu0 %v2102
        %2213 = vmatpush1.msra.mxu0 %v2101
        %2214 = vmatprep.subr.mxu0 %v2098
        %2215 = vmatpush1.msra.mxu0 %v2097
        %2216 = vmatprep.subr.mxu0 %v1993
        %2217 = vmatpush1.msra.mxu0 %v1992
        %2218 = vmatprep.subr.mxu0 %v1965
        %2219 = vmatpush1.msra.mxu0 %v1964
        %2220 = vmatprep.subr.mxu0 0.0
        %2221 = vmatpush2.msra.mxu0 0.0
        %2222 = vmatprep.subr.mxu0 0.0
        %2223 = vmatpush2.msra.mxu0 0.0
        %2224 = vmatprep.subr.mxu0 0.0
        %2225 = vmatpush2.msra.mxu0 0.0
        %2226 = vmatprep.subr.mxu0 0.0
        %2227 = vmatpush2.msra.mxu0 0.0
        %2228 = vmatprep.subr.mxu0 0.0
        %2229 = vmatpush2.msra.mxu0 0.0
        %2230 = vmatprep.subr.mxu0 0.0
        %2231 = vmatpush2.msra.mxu0 0.0
        %2232 = vmatprep.subr.mxu0 0.0
        %2233 = vmatpush2.msra.mxu0 0.0
        %2234 = vmatprep.subr.mxu0 0.0
        %2235 = vmatpush2.msra.mxu0 0.0
        %2236 = vmatprep.subr.mxu0 0.0
        %2237 = vmatpush2.msra.mxu0 0.0
        %2238 = vmatprep.subr.mxu0 0.0
        %2239 = vmatpush2.msra.mxu0 0.0
        %2240 = vmatprep.subr.mxu0 0.0
        %2241 = vmatpush2.msra.mxu0 0.0
        %2242 = vmatprep.subr.mxu0 0.0
        %2243 = vmatpush2.msra.mxu0 0.0
        %2244 = vmatprep.subr.mxu0 0.0
        %2245 = vmatpush2.msra.mxu0 0.0
        %2246 = vmatprep.subr.mxu0 0.0
        %2247 = vmatpush2.msra.mxu0 0.0
        %2248 = vmatprep.subr.mxu0 0.0
        %2249 = vmatpush2.msra.mxu0 0.0
        %2250 = vmatprep.subr.mxu0 0.0
        %2251 = vmatpush2.msra.mxu0 0.0
        %2252 = vmatprep.mubr.f32.mxu0 0.0
        %2253 = vmatmul.mubr.f32.gmra.mxu0 %v806
        %v2254 = vpop.f32.mrf.mxu0
        %v2255 = vadd.f32 0.0, %v2254
        %v2256 = vpop.f32.mrf.mxu0
        %v2257 = vadd.f32 0.0, %v2256
        %2258 = vmatprep.mubr.f32.mxu0 0.0
        %2259 = vmatmul.mubr.f32.gmra.mxu0 %v809
        %v2260 = vpop.f32.mrf.mxu0
        %v2261 = vadd.f32 0.0, %v2260
        %v2262 = vpop.f32.mrf.mxu0
        %v2263 = vadd.f32 0.0, %v2262
        %2264 = vdwg.mxu0
        %v2265 = vmul.f32 %v2178, %v2184
        %v2266 = vmul.f32 %v2180, %v2186
        %v2267 = vmul.f32 %v2255, %v2261
        %v2268 = vmul.f32 %v2257, %v2263
        %v2269 = vadd.f32 %v1619, %v2265
        %v2270 = vadd.f32 %v1620, %v2266
        %v2271 = vadd.f32 %v1621, %v2267
        %v2272 = vadd.f32 %v1622, %v2268
        %2273 = vst [vmem:[%s243] sm:$0xff] %v2269
        %2274 = vst [vmem:[%s243 + $0x8] sm:$0xff] %v2270
        %2275 = vst [vmem:[%s243 + $0x10] sm:$0xff] %v2271
        %2276 = vst [vmem:[%s243 + $0x18] sm:$0xff] %v2272
        %s2277 = sand.u32 %s118, 1
        %s2278 = scalar_lea.sflag [#allocation4], %s2277
        %s2279 = sand.u32 %s118, 1
        %s2280 = smul.addr %s2279, 32
        %s2281 = scalar_lea.vmem [#allocation3], %s2280
        // Predicated region
        $region33: #{tpu_custom_call.1} parent=31 // pred_check
          %p2282 = pneg %p128
        $region34: #{tpu_custom_call.1} parent=31 // pred_check_branch
          %2284 = sbr.rel (%p2282) target = $region36
        $region35: #{tpu_custom_call.1} parent=31 // pred_region
          %s2285 = smul.u32 4, %s22
          %s2287 = ssub.s32 512, 512
          %2288 = vsyncadd %s2278, %s2287
          %s2289 = smul.addr %s21, 4
          %s2290 = sadd.s32 %s2285, %s2289
          %s2291 = smul.addr %s2290, 128
          %s2292 = scalar_lea.hbm %s3, %s2291
          %s2294 = sshll.u32 %s2281, 4
          %s2295 = int_to_ptr.vmem [resolvable:$true] %s2294
          %2297 = dma.vmem_to_hbm [thread:$0]  %s2295, 512, %s2292, %s2278
        $region36: #{tpu_custom_call.1} parent=31 // pred_fallthru
          _
      $region32: #{tpu_custom_call.1} parent=5 // pred_fallthru
        _
      %p2298 = scmp.le.s32.totalorder 2, %s12
      // Predicated region
      $region37: #{tpu_custom_call.1} parent=5 // pred_check
        %p2299 = pneg %p2298
      $region38: #{tpu_custom_call.1} parent=5 // pred_check_branch
        %2301 = sbr.rel (%p2299) target = $region40
      $region39: #{tpu_custom_call.1} parent=5 // pred_region
        %s2302 = ssub.s32 %s12, 2
        // Predicated region
        $region41: #{tpu_custom_call.1} parent=39 // pred_check
          %p2303 = pneg %p134
        $region42: #{tpu_custom_call.1} parent=39 // pred_check_branch
          %2305 = sbr.rel (%p2303) target = $region44
        $region43: #{tpu_custom_call.1} parent=39 // pred_region
          %s2306 = sand.u32 %s119, 1
          %s2307 = scalar_lea.sflag [#allocation4], %s2306
          %s2308 = sand.u32 %s119, 1
          %s2309 = smul.addr %s2308, 32
          %s2310 = scalar_lea.vmem [#allocation3], %s2309
          %2311 = dma.done %s2307, 512
        $region44: #{tpu_custom_call.1} parent=39 // pred_fallthru
          _
      $region40: #{tpu_custom_call.1} parent=5 // pred_fallthru
        _
    $region6: #{tpu_custom_call.1} parent=1 // loop_footer
      %s16 = sadd.s32 1, %s12
    $region7: #{tpu_custom_call.1} parent=1 // loop_footer_branch
      %11 = sbr.rel target = $region3
    $region8: #{tpu_custom_call.1} parent=1 // loop_exit
      _
    %2312 = vsyncpa [#allocation4], 1
    %s2313 = scalar_lea.sflag [#allocation4], 1
    %2314 = vsyncpa %s2313, 1

</llo_original>
